<compile_context>
chip_gen: v7x
topology: tpu7x:2x2x1
jax: 0.10.0
libtpu: 0.0.40
codegen_flags: <defaults>
</compile_context>

<pallas_src>
import functools

import jax
import jax.numpy as jnp
from jax import lax
from jax.experimental import pallas as pl
from jax.experimental.pallas import tpu as pltpu


def _round_up(a, m):
    return ((a + m - 1) // m) * m


def _erf_f32(x):
    # Abramowitz & Stegun 7.1.26 — accurate to ~1.5e-7 (float32 eps level).
    p = 0.3275911
    a1, a2, a3, a4, a5 = (0.254829592, -0.284496736, 1.421413741,
                          -1.453152027, 1.061405429)
    sgn = jnp.where(x >= 0.0, 1.0, -1.0)
    ax = jnp.abs(x)
    t = 1.0 / (1.0 + p * ax)
    poly = t * (a1 + t * (a2 + t * (a3 + t * (a4 + t * a5))))
    return sgn * (1.0 - poly * jnp.exp(-ax * ax))


def _gelu_exact(x):
    # nn.GELU() default (erf form): 0.5 * x * (1 + erf(x / sqrt(2)))
    return 0.5 * x * (1.0 + _erf_f32(x * 0.7071067811865476))


def moe_kernel(x_ref, liq_ref,
               w1_ref, b1_ref, g_ref, bt_ref, w2_ref,
               fw1x_ref, fw1l_ref, fb1_ref, fw2_ref, fb2_ref,
               out_ref, aux_ref,
               *, hidden_dim, num_experts, n_tokens):
    E = num_experts
    t = pl.program_id(0)
    xb = x_ref[...]                                      # (TN, D)  bf16
    lb = liq_ref[...]                                    # (TN, L)  bf16
    TN = xb.shape[0]

    # ---- fused router + uncertainty nets (2 small MXU ops instead of 4) ----
    h1 = (jnp.dot(xb, fw1x_ref[...], preferred_element_type=jnp.float32)
          + jnp.dot(lb, fw1l_ref[...], preferred_element_type=jnp.float32)
          + fb1_ref[...])
    h1 = _gelu_exact(h1)                                 # (TN, Hr+Hu) f32
    z = jnp.dot(h1.astype(jnp.bfloat16), fw2_ref[...],
                preferred_element_type=jnp.float32) + fb2_ref[...]   # (TN, E+1)
    logits = z[:, :E]
    u = jax.nn.sigmoid(z[:, E:E + 1])                    # (TN, 1) uncertainty

    m = jnp.max(logits, axis=-1, keepdims=True)
    ex = jnp.exp(logits - m)
    probs = ex / jnp.sum(ex, axis=-1, keepdims=True)     # (TN, E)

    # ---- top-2 gating (k hard-coded to 2 in the reference forward) ---------
    col = lax.broadcasted_iota(jnp.int32, probs.shape, 1)
    p1 = jnp.max(probs, axis=-1, keepdims=True)
    idx1 = jnp.min(jnp.where(probs == p1, col, E), axis=-1, keepdims=True)
    masked = jnp.where(col == idx1, -jnp.inf, probs)
    p2 = jnp.max(masked, axis=-1, keepdims=True)
    idx2 = jnp.min(jnp.where(masked == p2, col, E), axis=-1, keepdims=True)
    denom = p1 + p2
    p1n = p1 / denom                                     # (TN, 1)
    p2n = p2 / denom                                     # (TN, 1)

    # token-validity mask for the padded tail of the last token tile
    row = lax.broadcasted_iota(jnp.int32, (TN, 1), 0) + t * TN
    valid = (row < n_tokens).astype(jnp.float32)         # (TN, 1)

    # ---- packed expert stack: ONE (TN,D)@(D,Htot) matmul, per-segment LN ---
    h = (jnp.dot(xb, w1_ref[...], preferred_element_type=jnp.float32)
         + b1_ref[...])                                  # (TN, Htot) f32
    gamma = g_ref[...]                                   # (1, Htot)
    beta = bt_ref[...]                                   # (1, Htot)

    seg_acts = []
    gate_cols = []
    loads = []
    off = 0
    for e in range(E):
        he = hidden_dim * (e + 1)
        gate_e = (jnp.where(idx1 == e, p1n, 0.0)
                  + jnp.where(idx2 == e, p2n, 0.0))      # (TN, 1)
        gate_cols.append(gate_e)
        hit = ((idx1 == e) | (idx2 == e)).astype(jnp.float32)
        loads.append(jnp.sum(hit * valid, axis=0, keepdims=True))   # (1, 1)

        # LayerNorm over this expert's true hidden width: single fused pass
        # (sum h, sum h^2 -> biased var), as torch.nn.LayerNorm (eps=1e-5).
        hs = h[:, off:off + he]
        inv_cnt = 1.0 / float(he)
        mean = jnp.sum(hs, axis=-1, keepdims=True) * inv_cnt
        ex2 = jnp.sum(hs * hs, axis=-1, keepdims=True) * inv_cnt
        var = ex2 - mean * mean
        inv = lax.rsqrt(var + 1e-5)
        hn = (hs - mean) * inv * gamma[:, off:off + he] + beta[:, off:off + he]
        # Dropout: identity (eval mode).
        seg_acts.append(gate_e * _gelu_exact(hn))        # gate folded in here
        off += he

    # Gate columns appended so the trailing E rows of w2_ref (the stacked b2
    # biases) fold the per-expert output bias into the SAME MXU matmul.
    a_ext = jnp.concatenate(seg_acts + gate_cols, axis=-1).astype(jnp.bfloat16)
    y = jnp.dot(a_ext, w2_ref[...], preferred_element_type=jnp.float32)
    out_ref[...] = y.astype(out_ref.dtype)               # single store per tile

    # ---- lane-dense aux row: lanes [0,E) expert loads, lane E = sum(unc) ----
    unc = jnp.sum(u * valid, axis=0, keepdims=True)      # (1, 1)
    lane = lax.broadcasted_iota(jnp.int32, (1, 128), 1)
    row_vals = jnp.where(lane == E, unc, 0.0)
    for e in range(E):
        row_vals = row_vals + jnp.where(lane == e, loads[e], 0.0)
    aux_ref[...] = jnp.broadcast_to(row_vals.reshape(1, 1, 128), (1, 8, 128))


def adaptive_moe_forward(x, liquid_state, params, *, hidden_dim, num_experts,
                         token_tile=None, out_dtype=None):
    B, S, D = x.shape
    L = liquid_state.shape[-1]
    N = B * S
    E = num_experts
    assert E >= 2, "top-2 routing requires num_experts >= 2"
    assert E + 1 <= 128, "aux reduction packs E+1 values into one 128-lane row"
    Htot = hidden_dim * (E * (E + 1)) // 2
    out_dtype = x.dtype if out_dtype is None else out_dtype

    # ---- generation-aware sizing -------------------------------------------
    try:
        vmem_cap = int(pltpu.get_tpu_info().vmem_capacity_bytes)
    except Exception:                       # fall back to v7x-safe assumptions
        vmem_cap = 64 * 1024 * 1024
    if token_tile is None:
        # 128 MiB-VMEM parts (v5e/v6e): larger tiles amortize the ~0.35us
        # per-grid-step overhead; keep 256 on the 64 MiB-per-TC v7x.
        token_tile = 512 if vmem_cap >= 96 * 1024 * 1024 else 256

    # Token tile: multiple of 8 sublanes, at most token_tile; pad + mask tail.
    TN = max(8, _round_up(min(token_tile, _round_up(N, 8)), 8))
    n_tiles = -(-N // TN)
    if n_tiles < 2 and N > 8:
        # >= 2 tiles so the "parallel" token axis can feed both v7x TensorCores.
        TN = _round_up(-(-N // 2), 8)
        n_tiles = -(-N // TN)
    N_pad = n_tiles * TN

    x_flat = x.reshape(N, D)
    liq_flat = jnp.broadcast_to(liquid_state[:, None, :], (B, S, L)).reshape(N, L)
    if N_pad != N:
        x_flat = jnp.pad(x_flat, ((0, N_pad - N), (0, 0)))
        liq_flat = jnp.pad(liq_flat, ((0, N_pad - N), (0, 0)))
    x_bf = x_flat.astype(jnp.bfloat16)
    liq_bf = liq_flat.astype(jnp.bfloat16)

    # ---- pack per-expert params into dense MXU operands (no Hmax padding) ---
    experts = params["experts"]
    W1p = jnp.concatenate([p["W1"] for p in experts], axis=1)       # (D, Htot)
    b1p = jnp.concatenate([p["b1"] for p in experts])[None, :]      # (1, Htot)
    gmp = jnp.concatenate([p["gamma"] for p in experts])[None, :]   # (1, Htot)
    btp = jnp.concatenate([p["beta"] for p in experts])[None, :]    # (1, Htot)
    W2p = jnp.concatenate([p["W2"] for p in experts], axis=0)       # (Htot, D)
    b2s = jnp.stack([p["b2"] for p in experts], axis=0)             # (E, D)
    W2e = jnp.concatenate([W2p, b2s], axis=0)                       # (Htot+E, D)

    Hr = params["Wr1"].shape[1]
    Hu = params["Wu1"].shape[1]
    HrHu = Hr + Hu
    Fw1x = jnp.concatenate([params["Wr1"][:D], params["Wu1"]], axis=1)  # (D, Hr+Hu)
    Fw1l = jnp.pad(params["Wr1"][D:], ((0, 0), (0, Hu)))                # (L, Hr+Hu)
    Fb1 = jnp.concatenate([params["br1"], params["bu1"]])[None, :]      # (1, Hr+Hu)
    Fw2 = jnp.zeros((HrHu, E + 1), jnp.float32)
    Fw2 = Fw2.at[:Hr, :E].set(params["Wr2"]).at[Hr:, E:].set(params["Wu2"])
    Fb2 = jnp.concatenate([params["br2"], params["bu2"]])[None, :]      # (1, E+1)

    # bf16 MXU operands; biases / LN params stay f32.
    W1p = W1p.astype(jnp.bfloat16)
    W2e = W2e.astype(jnp.bfloat16)
    Fw1x = Fw1x.astype(jnp.bfloat16)
    Fw1l = Fw1l.astype(jnp.bfloat16)
    Fw2 = Fw2.astype(jnp.bfloat16)

    grid = (n_tiles,)
    tok = lambda t: (t, 0)

    def _wspec(shape):
        # Constant block index -> single buffer (default 2-deep buffering only
        # doubles resident VMEM without hiding any DMA).
        return pl.BlockSpec(shape, lambda t: (0,) * len(shape),
                            pipeline_mode=pl.Buffered(1))

    kernel = functools.partial(moe_kernel, hidden_dim=hidden_dim,
                               num_experts=num_experts, n_tokens=N)

    # ---- VMEM budget / compiler params --------------------------------------
    BF16, F32 = 2, 4
    OB = jnp.dtype(out_dtype).itemsize
    est_vmem = (
        2 * TN * (D + L) * BF16                      # x / liquid tiles (2-deep)
        + 2 * (TN * D * OB + 8 * 128 * F32)          # out / aux tiles (2-deep)
        + (D * Htot + (Htot + E) * D) * BF16         # packed expert weights (1-deep)
        + 3 * Htot * F32                             # b1 / gamma / beta
        + ((D + L) * HrHu + HrHu * (E + 1)) * BF16   # fused router/uncertainty mats
        + (HrHu + E + 1) * F32                       # fused biases
        + 3 * TN * Htot * F32                        # live f32 intermediates
    )
    compiler_kwargs = dict(dimension_semantics=("parallel",))
    scoped_default = 16 * 1024 * 1024                # v5e default scoped limit
    if est_vmem > scoped_default:
        cap = (3 * vmem_cap) // 4                    # ~48 MiB v7x, ~96 MiB v5e/v6e
        compiler_kwargs["vmem_limit_bytes"] = int(
            min(max(2 * est_vmem, scoped_default), cap))

    out_pad, aux = pl.pallas_call(
        kernel,
        grid_spec=pltpu.PrefetchScalarGridSpec(
            num_scalar_prefetch=0,
            grid=grid,
            in_specs=[
                pl.BlockSpec((TN, D), tok),          # x (bf16)
                pl.BlockSpec((TN, L), tok),          # liquid (bf16)
                _wspec((D, Htot)),                   # packed expert W1
                _wspec((1, Htot)),                   # packed b1
                _wspec((1, Htot)),                   # packed LN gamma
                _wspec((1, Htot)),                   # packed LN beta
                _wspec((Htot + E, D)),               # packed expert W2 (+ b2 rows)
                _wspec((D, HrHu)),                   # fused router/unc W1 (x part)
                _wspec((L, HrHu)),                   # fused router/unc W1 (liquid)
                _wspec((1, HrHu)),                   # fused b1
                _wspec((HrHu, E + 1)),               # fused block-diag W2
                _wspec((1, E + 1)),                  # fused b2
            ],
            out_specs=[
                pl.BlockSpec((TN, D), tok),                        # mixed output
                pl.BlockSpec((1, 8, 128), lambda t: (t, 0, 0)),    # aux reduction
            ],
        ),
        out_shape=[
            jax.ShapeDtypeStruct((N_pad, D), out_dtype),
            jax.ShapeDtypeStruct((n_tiles, 8, 128), jnp.float32),
        ],
        compiler_params=pltpu.CompilerParams(**compiler_kwargs),
    )(x_bf, liq_bf, W1p, b1p, gmp, btp, W2e, Fw1x, Fw1l, Fb1, Fw2, Fb2)

    output = out_pad[:N].reshape(B, S, D)
    aux_row = aux[:, 0, :].sum(axis=0)               # (128,)
    expert_loads = aux_row[:E]
    expert_loads = expert_loads / expert_loads.sum()
    mean_uncertainty = aux_row[E] / N
    uniform = 1.0 / E
    load_balance_loss = 0.01 * jnp.mean((expert_loads - uniform) ** 2)
    aux_losses = {
        "load_balance_loss": load_balance_loss,
        "expert_loads": expert_loads,
        "mean_uncertainty": mean_uncertainty,
    }
    return output, aux_losses


def init_params(key, num_experts, input_dim, hidden_dim, liquid_dim):
    E, D, H, L = num_experts, input_dim, hidden_dim, liquid_dim
    Hu = H // 2
    keys = jax.random.split(key, 4 * E + 8)
    ki = 0
    experts = []
    for i in range(E):
        h_i = H * (i + 1)
        W1 = 0.05 * jax.random.normal(keys[ki], (D, h_i)); ki += 1
        b1 = 0.05 * jax.random.normal(keys[ki], (h_i,)); ki += 1
        gamma = jnp.ones((h_i,), jnp.float32)            # LayerNorm gamma = 1
        beta = jnp.zeros((h_i,), jnp.float32)            # LayerNorm beta = 0
        W2 = 0.05 * jax.random.normal(keys[ki], (h_i, D)); ki += 1
        b2 = 0.05 * jax.random.normal(keys[ki], (D,)); ki += 1
        experts.append({"W1": W1, "b1": b1, "gamma": gamma, "beta": beta,
                        "W2": W2, "b2": b2})
    Wr1 = 0.05 * jax.random.normal(keys[ki], (D + L, H)); ki += 1
    br1 = 0.05 * jax.random.normal(keys[ki], (H,)); ki += 1
    Wr2 = 0.05 * jax.random.normal(keys[ki], (H, E)); ki += 1
    br2 = 0.05 * jax.random.normal(keys[ki], (E,)); ki += 1
    Wu1 = 0.05 * jax.random.normal(keys[ki], (D, Hu)); ki += 1
    bu1 = 0.05 * jax.random.normal(keys[ki], (Hu,)); ki += 1
    Wu2 = 0.05 * jax.random.normal(keys[ki], (Hu, 1)); ki += 1
    bu2 = 0.05 * jax.random.normal(keys[ki], (1,)); ki += 1
    return {"experts": experts, "Wr1": Wr1, "br1": br1, "Wr2": Wr2, "br2": br2,
            "Wu1": Wu1, "bu1": bu1, "Wu2": Wu2, "bu2": bu2}


if __name__ == "__main__":
    # Module hyperparameters (small, consistent with the reference forward).
    NUM_EXPERTS, INPUT_DIM, HIDDEN_DIM, LIQUID_DIM = 4, 32, 16, 8
    BATCH, SEQ = 2, 8

    key = jax.random.PRNGKey(0)
    kp, kx, kl = jax.random.split(key, 3)
    params = init_params(kp, NUM_EXPERTS, INPUT_DIM, HIDDEN_DIM, LIQUID_DIM)
    x = jax.random.normal(kx, (BATCH, SEQ, INPUT_DIM), jnp.float32)
    liquid_state = jax.random.normal(kl, (BATCH, LIQUID_DIM), jnp.float32)

    output, aux = adaptive_moe_forward(
        x, liquid_state, params,
        hidden_dim=HIDDEN_DIM, num_experts=NUM_EXPERTS)

    jax.block_until_ready(output)
    jax.block_until_ready(aux["load_balance_loss"])
    jax.block_until_ready(aux["expert_loads"])
    jax.block_until_ready(aux["mean_uncertainty"])
    print("KERNEL_OK")
</pallas_src>

<mosaic_0001>
module attributes {stable_mosaic.version = 11 : i64} {
  func.func @moe_kernel(%arg0: i32, %arg1: memref<8x32xbf16, #tpu.memory_space<vmem>>, %arg2: memref<8x8xbf16, #tpu.memory_space<vmem>>, %arg3: memref<32x160xbf16, #tpu.memory_space<vmem>>, %arg4: memref<1x160xf32, #tpu.memory_space<vmem>>, %arg5: memref<1x160xf32, #tpu.memory_space<vmem>>, %arg6: memref<1x160xf32, #tpu.memory_space<vmem>>, %arg7: memref<164x32xbf16, #tpu.memory_space<vmem>>, %arg8: memref<32x24xbf16, #tpu.memory_space<vmem>>, %arg9: memref<8x24xbf16, #tpu.memory_space<vmem>>, %arg10: memref<1x24xf32, #tpu.memory_space<vmem>>, %arg11: memref<24x5xbf16, #tpu.memory_space<vmem>>, %arg12: memref<1x5xf32, #tpu.memory_space<vmem>>, %arg13: memref<8x32xf32, #tpu.memory_space<vmem>>, %arg14: memref<1x8x128xf32, #tpu.memory_space<vmem>>) attributes {dimension_semantics = [#tpu.dimension_semantics<parallel>], iteration_bounds = array<i64: 2>, scalar_prefetch = 0 : i64, scratch_operands = 0 : i64, tpu.core_type = #tpu.core_type<tc>, window_params = [{transform_indices = @transform_0, window_bounds = array<i64: 8, 32>}, {transform_indices = @transform_1, window_bounds = array<i64: 8, 8>}, {pipeline_mode = #tpu.pipeline_mode<synchronous>, transform_indices = @transform_2, window_bounds = array<i64: 32, 160>}, {pipeline_mode = #tpu.pipeline_mode<synchronous>, transform_indices = @transform_3, window_bounds = array<i64: 1, 160>}, {pipeline_mode = #tpu.pipeline_mode<synchronous>, transform_indices = @transform_4, window_bounds = array<i64: 1, 160>}, {pipeline_mode = #tpu.pipeline_mode<synchronous>, transform_indices = @transform_5, window_bounds = array<i64: 1, 160>}, {pipeline_mode = #tpu.pipeline_mode<synchronous>, transform_indices = @transform_6, window_bounds = array<i64: 164, 32>}, {pipeline_mode = #tpu.pipeline_mode<synchronous>, transform_indices = @transform_7, window_bounds = array<i64: 32, 24>}, {pipeline_mode = #tpu.pipeline_mode<synchronous>, transform_indices = @transform_8, window_bounds = array<i64: 8, 24>}, {pipeline_mode = #tpu.pipeline_mode<synchronous>, transform_indices = @transform_9, window_bounds = array<i64: 1, 24>}, {pipeline_mode = #tpu.pipeline_mode<synchronous>, transform_indices = @transform_10, window_bounds = array<i64: 24, 5>}, {pipeline_mode = #tpu.pipeline_mode<synchronous>, transform_indices = @transform_11, window_bounds = array<i64: 1, 5>}, {transform_indices = @transform_12, window_bounds = array<i64: 8, 32>}, {transform_indices = @transform_13, window_bounds = array<i64: 1, 8, 128>}]} {
    %c0 = arith.constant 0 : index
    %c0_0 = arith.constant 0 : index
    %0 = vector.load %arg1[%c0, %c0_0] : memref<8x32xbf16, #tpu.memory_space<vmem>>, vector<8x32xbf16>
    %c0_1 = arith.constant 0 : index
    %c0_2 = arith.constant 0 : index
    %1 = vector.load %arg2[%c0_1, %c0_2] : memref<8x8xbf16, #tpu.memory_space<vmem>>, vector<8x8xbf16>
    %c0_3 = arith.constant 0 : index
    %c0_4 = arith.constant 0 : index
    %2 = vector.load %arg8[%c0_3, %c0_4] : memref<32x24xbf16, #tpu.memory_space<vmem>>, vector<32x24xbf16>
    %cst = arith.constant dense<0.000000e+00> : vector<8x24xf32>
    %3 = tpu.matmul %0, %2, %cst {dimension_numbers = #tpu.dot_dimension_numbers<[1], [0], [0], [1], [0, 0, 1, 1], [], []>} : vector<8x32xbf16>, vector<32x24xbf16>, vector<8x24xf32> -> vector<8x24xf32>
    %c0_5 = arith.constant 0 : index
    %c0_6 = arith.constant 0 : index
    %4 = vector.load %arg9[%c0_5, %c0_6] : memref<8x24xbf16, #tpu.memory_space<vmem>>, vector<8x24xbf16>
    %cst_7 = arith.constant dense<0.000000e+00> : vector<8x24xf32>
    %5 = tpu.matmul %1, %4, %cst_7 {dimension_numbers = #tpu.dot_dimension_numbers<[1], [0], [0], [1], [0, 0, 1, 1], [], []>} : vector<8x8xbf16>, vector<8x24xbf16>, vector<8x24xf32> -> vector<8x24xf32>
    %6 = arith.addf %3, %5 : vector<8x24xf32>
    %c0_8 = arith.constant 0 : index
    %c0_9 = arith.constant 0 : index
    %7 = vector.load %arg10[%c0_8, %c0_9] : memref<1x24xf32, #tpu.memory_space<vmem>>, vector<1x24xf32>
    %8 = vector.broadcast %7 : vector<1x24xf32> to vector<8x24xf32>
    %9 = arith.addf %6, %8 : vector<8x24xf32>
    %cst_10 = arith.constant 5.000000e-01 : f32
    %10 = vector.broadcast %cst_10 : f32 to vector<8x24xf32>
    %11 = arith.mulf %10, %9 : vector<8x24xf32>
    %cst_11 = arith.constant 0.707106769 : f32
    %12 = vector.broadcast %cst_11 : f32 to vector<8x24xf32>
    %13 = arith.mulf %9, %12 : vector<8x24xf32>
    %cst_12 = arith.constant 0.000000e+00 : f32
    %14 = vector.broadcast %cst_12 : f32 to vector<8x24xf32>
    %15 = arith.cmpf oge, %13, %14 : vector<8x24xf32>
    %cst_13 = arith.constant 1.000000e+00 : f32
    %cst_14 = arith.constant -1.000000e+00 : f32
    %16 = vector.broadcast %cst_13 : f32 to vector<8x24xf32>
    %17 = vector.broadcast %cst_14 : f32 to vector<8x24xf32>
    %18 = arith.select %15, %16, %17 : vector<8x24xi1>, vector<8x24xf32>
    %19 = math.absf %13 : vector<8x24xf32>
    %cst_15 = arith.constant 0.327591091 : f32
    %20 = vector.broadcast %cst_15 : f32 to vector<8x24xf32>
    %21 = arith.mulf %20, %19 : vector<8x24xf32>
    %cst_16 = arith.constant 1.000000e+00 : f32
    %22 = vector.broadcast %cst_16 : f32 to vector<8x24xf32>
    %23 = arith.addf %22, %21 : vector<8x24xf32>
    %cst_17 = arith.constant 1.000000e+00 : f32
    %24 = vector.broadcast %cst_17 : f32 to vector<8x24xf32>
    %25 = arith.divf %24, %23 : vector<8x24xf32>
    %cst_18 = arith.constant 1.06140542 : f32
    %26 = vector.broadcast %cst_18 : f32 to vector<8x24xf32>
    %27 = arith.mulf %25, %26 : vector<8x24xf32>
    %cst_19 = arith.constant -1.45315206 : f32
    %28 = vector.broadcast %cst_19 : f32 to vector<8x24xf32>
    %29 = arith.addf %28, %27 : vector<8x24xf32>
    %30 = arith.mulf %25, %29 : vector<8x24xf32>
    %cst_20 = arith.constant 1.42141378 : f32
    %31 = vector.broadcast %cst_20 : f32 to vector<8x24xf32>
    %32 = arith.addf %31, %30 : vector<8x24xf32>
    %33 = arith.mulf %25, %32 : vector<8x24xf32>
    %cst_21 = arith.constant -0.284496725 : f32
    %34 = vector.broadcast %cst_21 : f32 to vector<8x24xf32>
    %35 = arith.addf %34, %33 : vector<8x24xf32>
    %36 = arith.mulf %25, %35 : vector<8x24xf32>
    %cst_22 = arith.constant 0.254829586 : f32
    %37 = vector.broadcast %cst_22 : f32 to vector<8x24xf32>
    %38 = arith.addf %37, %36 : vector<8x24xf32>
    %39 = arith.mulf %25, %38 : vector<8x24xf32>
    %cst_23 = arith.constant 0.000000e+00 : f32
    %40 = vector.broadcast %cst_23 : f32 to vector<8x24xf32>
    %41 = arith.subf %40, %19 : vector<8x24xf32>
    %42 = arith.mulf %41, %19 : vector<8x24xf32>
    %43 = math.exp %42 : vector<8x24xf32>
    %44 = arith.mulf %39, %43 : vector<8x24xf32>
    %cst_24 = arith.constant 1.000000e+00 : f32
    %45 = vector.broadcast %cst_24 : f32 to vector<8x24xf32>
    %46 = arith.subf %45, %44 : vector<8x24xf32>
    %47 = arith.mulf %18, %46 : vector<8x24xf32>
    %cst_25 = arith.constant 1.000000e+00 : f32
    %48 = vector.broadcast %cst_25 : f32 to vector<8x24xf32>
    %49 = arith.addf %48, %47 : vector<8x24xf32>
    %50 = arith.mulf %11, %49 : vector<8x24xf32>
    %51 = arith.truncf %50 : vector<8x24xf32> to vector<8x24xbf16>
    %c0_26 = arith.constant 0 : index
    %c0_27 = arith.constant 0 : index
    %52 = vector.load %arg11[%c0_26, %c0_27] : memref<24x5xbf16, #tpu.memory_space<vmem>>, vector<24x5xbf16>
    %cst_28 = arith.constant dense<0.000000e+00> : vector<8x5xf32>
    %53 = tpu.matmul %51, %52, %cst_28 {dimension_numbers = #tpu.dot_dimension_numbers<[1], [0], [0], [1], [0, 0, 1, 1], [], []>} : vector<8x24xbf16>, vector<24x5xbf16>, vector<8x5xf32> -> vector<8x5xf32>
    %c0_29 = arith.constant 0 : index
    %c0_30 = arith.constant 0 : index
    %54 = vector.load %arg12[%c0_29, %c0_30] : memref<1x5xf32, #tpu.memory_space<vmem>>, vector<1x5xf32>
    %55 = vector.broadcast %54 : vector<1x5xf32> to vector<8x5xf32>
    %56 = arith.addf %53, %55 : vector<8x5xf32>
    %57 = vector.extract_strided_slice %56 {offsets = [0, 0], sizes = [8, 4], strides = [1, 1]} : vector<8x5xf32> to vector<8x4xf32>
    %58 = vector.extract_strided_slice %56 {offsets = [0, 4], sizes = [8, 1], strides = [1, 1]} : vector<8x5xf32> to vector<8x1xf32>
    %59 = arith.negf %58 : vector<8x1xf32>
    %60 = math.exp %59 : vector<8x1xf32>
    %cst_31 = arith.constant 1.000000e+00 : f32
    %61 = vector.broadcast %cst_31 : f32 to vector<8x1xf32>
    %62 = arith.addf %61, %60 : vector<8x1xf32>
    %63 = arith.divf %61, %62 : vector<8x1xf32>
    %cst_32 = arith.constant dense<0xFF800000> : vector<8xf32>
    %64 = vector.multi_reduction <maximumf>, %57, %cst_32 [1] : vector<8x4xf32> to vector<8xf32>
    %65 = vector.shape_cast %64 : vector<8xf32> to vector<8x1xf32>
    %66 = vector.broadcast %65 : vector<8x1xf32> to vector<8x4xf32>
    %67 = arith.subf %57, %66 : vector<8x4xf32>
    %68 = math.exp %67 : vector<8x4xf32>
    %cst_33 = arith.constant dense<0.000000e+00> : vector<8xf32>
    %69 = vector.multi_reduction <add>, %68, %cst_33 [1] : vector<8x4xf32> to vector<8xf32>
    %70 = vector.shape_cast %69 : vector<8xf32> to vector<8x1xf32>
    %71 = vector.broadcast %70 : vector<8x1xf32> to vector<8x4xf32>
    %72 = arith.divf %68, %71 : vector<8x4xf32>
    %73 = tpu.iota {dimensions = array<i32: 1>} : vector<8x4xi32>
    %cst_34 = arith.constant dense<0xFF800000> : vector<8xf32>
    %74 = vector.multi_reduction <maximumf>, %72, %cst_34 [1] : vector<8x4xf32> to vector<8xf32>
    %75 = vector.shape_cast %74 : vector<8xf32> to vector<8x1xf32>
    %76 = vector.broadcast %75 : vector<8x1xf32> to vector<8x4xf32>
    %77 = arith.cmpf oeq, %72, %76 : vector<8x4xf32>
    %c4_i32 = arith.constant 4 : i32
    %78 = vector.broadcast %c4_i32 : i32 to vector<8x4xi32>
    %79 = arith.select %77, %73, %78 : vector<8x4xi1>, vector<8x4xi32>
    %cst_35 = arith.constant dense<2147483647> : vector<8xi32>
    %80 = vector.multi_reduction <minsi>, %79, %cst_35 [1] : vector<8x4xi32> to vector<8xi32>
    %81 = vector.shape_cast %80 : vector<8xi32> to vector<8x1xi32>
    %82 = vector.broadcast %81 : vector<8x1xi32> to vector<8x4xi32>
    %83 = arith.cmpi eq, %73, %82 : vector<8x4xi32>
    %cst_36 = arith.constant 0xFF800000 : f32
    %84 = vector.broadcast %cst_36 : f32 to vector<8x4xf32>
    %85 = arith.select %83, %84, %72 : vector<8x4xi1>, vector<8x4xf32>
    %cst_37 = arith.constant dense<0xFF800000> : vector<8xf32>
    %86 = vector.multi_reduction <maximumf>, %85, %cst_37 [1] : vector<8x4xf32> to vector<8xf32>
    %87 = vector.shape_cast %86 : vector<8xf32> to vector<8x1xf32>
    %88 = vector.broadcast %87 : vector<8x1xf32> to vector<8x4xf32>
    %89 = arith.cmpf oeq, %85, %88 : vector<8x4xf32>
    %c4_i32_38 = arith.constant 4 : i32
    %90 = vector.broadcast %c4_i32_38 : i32 to vector<8x4xi32>
    %91 = arith.select %89, %73, %90 : vector<8x4xi1>, vector<8x4xi32>
    %cst_39 = arith.constant dense<2147483647> : vector<8xi32>
    %92 = vector.multi_reduction <minsi>, %91, %cst_39 [1] : vector<8x4xi32> to vector<8xi32>
    %93 = vector.shape_cast %92 : vector<8xi32> to vector<8x1xi32>
    %94 = arith.addf %75, %87 : vector<8x1xf32>
    %95 = arith.divf %75, %94 : vector<8x1xf32>
    %96 = arith.divf %87, %94 : vector<8x1xf32>
    %97 = tpu.iota {dimensions = array<i32: 0>} : vector<8x1xi32>
    %c8_i32 = arith.constant 8 : i32
    %98 = arith.muli %arg0, %c8_i32 : i32
    %99 = vector.broadcast %98 : i32 to vector<8x1xi32>
    %100 = arith.addi %97, %99 : vector<8x1xi32>
    %c16_i32 = arith.constant 16 : i32
    %101 = vector.broadcast %c16_i32 : i32 to vector<8x1xi32>
    %102 = arith.cmpi slt, %100, %101 : vector<8x1xi32>
    %103 = arith.extui %102 : vector<8x1xi1> to vector<8x1xi32>
    %104 = arith.sitofp %103 : vector<8x1xi32> to vector<8x1xf32>
    %c0_40 = arith.constant 0 : index
    %c0_41 = arith.constant 0 : index
    %105 = vector.load %arg3[%c0_40, %c0_41] : memref<32x160xbf16, #tpu.memory_space<vmem>>, vector<32x160xbf16>
    %cst_42 = arith.constant dense<0.000000e+00> : vector<8x160xf32>
    %106 = tpu.matmul %0, %105, %cst_42 {dimension_numbers = #tpu.dot_dimension_numbers<[1], [0], [0], [1], [0, 0, 1, 1], [], []>} : vector<8x32xbf16>, vector<32x160xbf16>, vector<8x160xf32> -> vector<8x160xf32>
    %c0_43 = arith.constant 0 : index
    %c0_44 = arith.constant 0 : index
    %107 = vector.load %arg4[%c0_43, %c0_44] : memref<1x160xf32, #tpu.memory_space<vmem>>, vector<1x160xf32>
    %108 = vector.broadcast %107 : vector<1x160xf32> to vector<8x160xf32>
    %109 = arith.addf %106, %108 : vector<8x160xf32>
    %c0_45 = arith.constant 0 : index
    %c0_46 = arith.constant 0 : index
    %110 = vector.load %arg5[%c0_45, %c0_46] : memref<1x160xf32, #tpu.memory_space<vmem>>, vector<1x160xf32>
    %c0_47 = arith.constant 0 : index
    %c0_48 = arith.constant 0 : index
    %111 = vector.load %arg6[%c0_47, %c0_48] : memref<1x160xf32, #tpu.memory_space<vmem>>, vector<1x160xf32>
    %c0_i32 = arith.constant 0 : i32
    %112 = vector.broadcast %c0_i32 : i32 to vector<8x1xi32>
    %113 = arith.cmpi eq, %81, %112 : vector<8x1xi32>
    %cst_49 = arith.constant 0.000000e+00 : f32
    %114 = vector.broadcast %cst_49 : f32 to vector<8x1xf32>
    %115 = arith.select %113, %95, %114 : vector<8x1xi1>, vector<8x1xf32>
    %c0_i32_50 = arith.constant 0 : i32
    %116 = vector.broadcast %c0_i32_50 : i32 to vector<8x1xi32>
    %117 = arith.cmpi eq, %93, %116 : vector<8x1xi32>
    %cst_51 = arith.constant 0.000000e+00 : f32
    %118 = vector.broadcast %cst_51 : f32 to vector<8x1xf32>
    %119 = arith.select %117, %96, %118 : vector<8x1xi1>, vector<8x1xf32>
    %120 = arith.addf %115, %119 : vector<8x1xf32>
    %c0_i32_52 = arith.constant 0 : i32
    %121 = vector.broadcast %c0_i32_52 : i32 to vector<8x1xi32>
    %122 = arith.cmpi eq, %81, %121 : vector<8x1xi32>
    %c0_i32_53 = arith.constant 0 : i32
    %123 = vector.broadcast %c0_i32_53 : i32 to vector<8x1xi32>
    %124 = arith.cmpi eq, %93, %123 : vector<8x1xi32>
    %125 = arith.ori %122, %124 : vector<8x1xi1>
    %126 = arith.extui %125 : vector<8x1xi1> to vector<8x1xi32>
    %127 = arith.sitofp %126 : vector<8x1xi32> to vector<8x1xf32>
    %128 = arith.mulf %127, %104 : vector<8x1xf32>
    %cst_54 = arith.constant dense<0.000000e+00> : vector<1xf32>
    %129 = vector.multi_reduction <add>, %128, %cst_54 [0] : vector<8x1xf32> to vector<1xf32>
    %130 = vector.shape_cast %129 : vector<1xf32> to vector<1x1xf32>
    %131 = vector.extract_strided_slice %109 {offsets = [0, 0], sizes = [8, 16], strides = [1, 1]} : vector<8x160xf32> to vector<8x16xf32>
    %cst_55 = arith.constant dense<0.000000e+00> : vector<8xf32>
    %132 = vector.multi_reduction <add>, %131, %cst_55 [1] : vector<8x16xf32> to vector<8xf32>
    %133 = vector.shape_cast %132 : vector<8xf32> to vector<8x1xf32>
    %cst_56 = arith.constant 6.250000e-02 : f32
    %134 = vector.broadcast %cst_56 : f32 to vector<8x1xf32>
    %135 = arith.mulf %133, %134 : vector<8x1xf32>
    %136 = arith.mulf %131, %131 : vector<8x16xf32>
    %cst_57 = arith.constant dense<0.000000e+00> : vector<8xf32>
    %137 = vector.multi_reduction <add>, %136, %cst_57 [1] : vector<8x16xf32> to vector<8xf32>
    %138 = vector.shape_cast %137 : vector<8xf32> to vector<8x1xf32>
    %cst_58 = arith.constant 6.250000e-02 : f32
    %139 = vector.broadcast %cst_58 : f32 to vector<8x1xf32>
    %140 = arith.mulf %138, %139 : vector<8x1xf32>
    %141 = arith.mulf %135, %135 : vector<8x1xf32>
    %142 = arith.subf %140, %141 : vector<8x1xf32>
    %cst_59 = arith.constant 9.99999974E-6 : f32
    %143 = vector.broadcast %cst_59 : f32 to vector<8x1xf32>
    %144 = arith.addf %142, %143 : vector<8x1xf32>
    %145 = math.rsqrt %144 : vector<8x1xf32>
    %146 = vector.broadcast %135 : vector<8x1xf32> to vector<8x16xf32>
    %147 = arith.subf %131, %146 : vector<8x16xf32>
    %148 = vector.broadcast %145 : vector<8x1xf32> to vector<8x16xf32>
    %149 = arith.mulf %147, %148 : vector<8x16xf32>
    %150 = vector.extract_strided_slice %110 {offsets = [0, 0], sizes = [1, 16], strides = [1, 1]} : vector<1x160xf32> to vector<1x16xf32>
    %151 = vector.broadcast %150 : vector<1x16xf32> to vector<8x16xf32>
    %152 = arith.mulf %149, %151 : vector<8x16xf32>
    %153 = vector.extract_strided_slice %111 {offsets = [0, 0], sizes = [1, 16], strides = [1, 1]} : vector<1x160xf32> to vector<1x16xf32>
    %154 = vector.broadcast %153 : vector<1x16xf32> to vector<8x16xf32>
    %155 = arith.addf %152, %154 : vector<8x16xf32>
    %cst_60 = arith.constant 5.000000e-01 : f32
    %156 = vector.broadcast %cst_60 : f32 to vector<8x16xf32>
    %157 = arith.mulf %156, %155 : vector<8x16xf32>
    %cst_61 = arith.constant 0.707106769 : f32
    %158 = vector.broadcast %cst_61 : f32 to vector<8x16xf32>
    %159 = arith.mulf %155, %158 : vector<8x16xf32>
    %cst_62 = arith.constant 0.000000e+00 : f32
    %160 = vector.broadcast %cst_62 : f32 to vector<8x16xf32>
    %161 = arith.cmpf oge, %159, %160 : vector<8x16xf32>
    %cst_63 = arith.constant 1.000000e+00 : f32
    %cst_64 = arith.constant -1.000000e+00 : f32
    %162 = vector.broadcast %cst_63 : f32 to vector<8x16xf32>
    %163 = vector.broadcast %cst_64 : f32 to vector<8x16xf32>
    %164 = arith.select %161, %162, %163 : vector<8x16xi1>, vector<8x16xf32>
    %165 = math.absf %159 : vector<8x16xf32>
    %cst_65 = arith.constant 0.327591091 : f32
    %166 = vector.broadcast %cst_65 : f32 to vector<8x16xf32>
    %167 = arith.mulf %166, %165 : vector<8x16xf32>
    %cst_66 = arith.constant 1.000000e+00 : f32
    %168 = vector.broadcast %cst_66 : f32 to vector<8x16xf32>
    %169 = arith.addf %168, %167 : vector<8x16xf32>
    %cst_67 = arith.constant 1.000000e+00 : f32
    %170 = vector.broadcast %cst_67 : f32 to vector<8x16xf32>
    %171 = arith.divf %170, %169 : vector<8x16xf32>
    %cst_68 = arith.constant 1.06140542 : f32
    %172 = vector.broadcast %cst_68 : f32 to vector<8x16xf32>
    %173 = arith.mulf %171, %172 : vector<8x16xf32>
    %cst_69 = arith.constant -1.45315206 : f32
    %174 = vector.broadcast %cst_69 : f32 to vector<8x16xf32>
    %175 = arith.addf %174, %173 : vector<8x16xf32>
    %176 = arith.mulf %171, %175 : vector<8x16xf32>
    %cst_70 = arith.constant 1.42141378 : f32
    %177 = vector.broadcast %cst_70 : f32 to vector<8x16xf32>
    %178 = arith.addf %177, %176 : vector<8x16xf32>
    %179 = arith.mulf %171, %178 : vector<8x16xf32>
    %cst_71 = arith.constant -0.284496725 : f32
    %180 = vector.broadcast %cst_71 : f32 to vector<8x16xf32>
    %181 = arith.addf %180, %179 : vector<8x16xf32>
    %182 = arith.mulf %171, %181 : vector<8x16xf32>
    %cst_72 = arith.constant 0.254829586 : f32
    %183 = vector.broadcast %cst_72 : f32 to vector<8x16xf32>
    %184 = arith.addf %183, %182 : vector<8x16xf32>
    %185 = arith.mulf %171, %184 : vector<8x16xf32>
    %cst_73 = arith.constant 0.000000e+00 : f32
    %186 = vector.broadcast %cst_73 : f32 to vector<8x16xf32>
    %187 = arith.subf %186, %165 : vector<8x16xf32>
    %188 = arith.mulf %187, %165 : vector<8x16xf32>
    %189 = math.exp %188 : vector<8x16xf32>
    %190 = arith.mulf %185, %189 : vector<8x16xf32>
    %cst_74 = arith.constant 1.000000e+00 : f32
    %191 = vector.broadcast %cst_74 : f32 to vector<8x16xf32>
    %192 = arith.subf %191, %190 : vector<8x16xf32>
    %193 = arith.mulf %164, %192 : vector<8x16xf32>
    %cst_75 = arith.constant 1.000000e+00 : f32
    %194 = vector.broadcast %cst_75 : f32 to vector<8x16xf32>
    %195 = arith.addf %194, %193 : vector<8x16xf32>
    %196 = arith.mulf %157, %195 : vector<8x16xf32>
    %197 = vector.broadcast %120 : vector<8x1xf32> to vector<8x16xf32>
    %198 = arith.mulf %197, %196 : vector<8x16xf32>
    %c1_i32 = arith.constant 1 : i32
    %199 = vector.broadcast %c1_i32 : i32 to vector<8x1xi32>
    %200 = arith.cmpi eq, %81, %199 : vector<8x1xi32>
    %cst_76 = arith.constant 0.000000e+00 : f32
    %201 = vector.broadcast %cst_76 : f32 to vector<8x1xf32>
    %202 = arith.select %200, %95, %201 : vector<8x1xi1>, vector<8x1xf32>
    %c1_i32_77 = arith.constant 1 : i32
    %203 = vector.broadcast %c1_i32_77 : i32 to vector<8x1xi32>
    %204 = arith.cmpi eq, %93, %203 : vector<8x1xi32>
    %cst_78 = arith.constant 0.000000e+00 : f32
    %205 = vector.broadcast %cst_78 : f32 to vector<8x1xf32>
    %206 = arith.select %204, %96, %205 : vector<8x1xi1>, vector<8x1xf32>
    %207 = arith.addf %202, %206 : vector<8x1xf32>
    %c1_i32_79 = arith.constant 1 : i32
    %208 = vector.broadcast %c1_i32_79 : i32 to vector<8x1xi32>
    %209 = arith.cmpi eq, %81, %208 : vector<8x1xi32>
    %c1_i32_80 = arith.constant 1 : i32
    %210 = vector.broadcast %c1_i32_80 : i32 to vector<8x1xi32>
    %211 = arith.cmpi eq, %93, %210 : vector<8x1xi32>
    %212 = arith.ori %209, %211 : vector<8x1xi1>
    %213 = arith.extui %212 : vector<8x1xi1> to vector<8x1xi32>
    %214 = arith.sitofp %213 : vector<8x1xi32> to vector<8x1xf32>
    %215 = arith.mulf %214, %104 : vector<8x1xf32>
    %cst_81 = arith.constant dense<0.000000e+00> : vector<1xf32>
    %216 = vector.multi_reduction <add>, %215, %cst_81 [0] : vector<8x1xf32> to vector<1xf32>
    %217 = vector.shape_cast %216 : vector<1xf32> to vector<1x1xf32>
    %218 = vector.extract_strided_slice %109 {offsets = [0, 16], sizes = [8, 32], strides = [1, 1]} : vector<8x160xf32> to vector<8x32xf32>
    %cst_82 = arith.constant dense<0.000000e+00> : vector<8xf32>
    %219 = vector.multi_reduction <add>, %218, %cst_82 [1] : vector<8x32xf32> to vector<8xf32>
    %220 = vector.shape_cast %219 : vector<8xf32> to vector<8x1xf32>
    %cst_83 = arith.constant 3.125000e-02 : f32
    %221 = vector.broadcast %cst_83 : f32 to vector<8x1xf32>
    %222 = arith.mulf %220, %221 : vector<8x1xf32>
    %223 = arith.mulf %218, %218 : vector<8x32xf32>
    %cst_84 = arith.constant dense<0.000000e+00> : vector<8xf32>
    %224 = vector.multi_reduction <add>, %223, %cst_84 [1] : vector<8x32xf32> to vector<8xf32>
    %225 = vector.shape_cast %224 : vector<8xf32> to vector<8x1xf32>
    %cst_85 = arith.constant 3.125000e-02 : f32
    %226 = vector.broadcast %cst_85 : f32 to vector<8x1xf32>
    %227 = arith.mulf %225, %226 : vector<8x1xf32>
    %228 = arith.mulf %222, %222 : vector<8x1xf32>
    %229 = arith.subf %227, %228 : vector<8x1xf32>
    %cst_86 = arith.constant 9.99999974E-6 : f32
    %230 = vector.broadcast %cst_86 : f32 to vector<8x1xf32>
    %231 = arith.addf %229, %230 : vector<8x1xf32>
    %232 = math.rsqrt %231 : vector<8x1xf32>
    %233 = vector.broadcast %222 : vector<8x1xf32> to vector<8x32xf32>
    %234 = arith.subf %218, %233 : vector<8x32xf32>
    %235 = vector.broadcast %232 : vector<8x1xf32> to vector<8x32xf32>
    %236 = arith.mulf %234, %235 : vector<8x32xf32>
    %237 = vector.extract_strided_slice %110 {offsets = [0, 16], sizes = [1, 32], strides = [1, 1]} : vector<1x160xf32> to vector<1x32xf32>
    %238 = vector.broadcast %237 : vector<1x32xf32> to vector<8x32xf32>
    %239 = arith.mulf %236, %238 : vector<8x32xf32>
    %240 = vector.extract_strided_slice %111 {offsets = [0, 16], sizes = [1, 32], strides = [1, 1]} : vector<1x160xf32> to vector<1x32xf32>
    %241 = vector.broadcast %240 : vector<1x32xf32> to vector<8x32xf32>
    %242 = arith.addf %239, %241 : vector<8x32xf32>
    %cst_87 = arith.constant 5.000000e-01 : f32
    %243 = vector.broadcast %cst_87 : f32 to vector<8x32xf32>
    %244 = arith.mulf %243, %242 : vector<8x32xf32>
    %cst_88 = arith.constant 0.707106769 : f32
    %245 = vector.broadcast %cst_88 : f32 to vector<8x32xf32>
    %246 = arith.mulf %242, %245 : vector<8x32xf32>
    %cst_89 = arith.constant 0.000000e+00 : f32
    %247 = vector.broadcast %cst_89 : f32 to vector<8x32xf32>
    %248 = arith.cmpf oge, %246, %247 : vector<8x32xf32>
    %cst_90 = arith.constant 1.000000e+00 : f32
    %cst_91 = arith.constant -1.000000e+00 : f32
    %249 = vector.broadcast %cst_90 : f32 to vector<8x32xf32>
    %250 = vector.broadcast %cst_91 : f32 to vector<8x32xf32>
    %251 = arith.select %248, %249, %250 : vector<8x32xi1>, vector<8x32xf32>
    %252 = math.absf %246 : vector<8x32xf32>
    %cst_92 = arith.constant 0.327591091 : f32
    %253 = vector.broadcast %cst_92 : f32 to vector<8x32xf32>
    %254 = arith.mulf %253, %252 : vector<8x32xf32>
    %cst_93 = arith.constant 1.000000e+00 : f32
    %255 = vector.broadcast %cst_93 : f32 to vector<8x32xf32>
    %256 = arith.addf %255, %254 : vector<8x32xf32>
    %cst_94 = arith.constant 1.000000e+00 : f32
    %257 = vector.broadcast %cst_94 : f32 to vector<8x32xf32>
    %258 = arith.divf %257, %256 : vector<8x32xf32>
    %cst_95 = arith.constant 1.06140542 : f32
    %259 = vector.broadcast %cst_95 : f32 to vector<8x32xf32>
    %260 = arith.mulf %258, %259 : vector<8x32xf32>
    %cst_96 = arith.constant -1.45315206 : f32
    %261 = vector.broadcast %cst_96 : f32 to vector<8x32xf32>
    %262 = arith.addf %261, %260 : vector<8x32xf32>
    %263 = arith.mulf %258, %262 : vector<8x32xf32>
    %cst_97 = arith.constant 1.42141378 : f32
    %264 = vector.broadcast %cst_97 : f32 to vector<8x32xf32>
    %265 = arith.addf %264, %263 : vector<8x32xf32>
    %266 = arith.mulf %258, %265 : vector<8x32xf32>
    %cst_98 = arith.constant -0.284496725 : f32
    %267 = vector.broadcast %cst_98 : f32 to vector<8x32xf32>
    %268 = arith.addf %267, %266 : vector<8x32xf32>
    %269 = arith.mulf %258, %268 : vector<8x32xf32>
    %cst_99 = arith.constant 0.254829586 : f32
    %270 = vector.broadcast %cst_99 : f32 to vector<8x32xf32>
    %271 = arith.addf %270, %269 : vector<8x32xf32>
    %272 = arith.mulf %258, %271 : vector<8x32xf32>
    %cst_100 = arith.constant 0.000000e+00 : f32
    %273 = vector.broadcast %cst_100 : f32 to vector<8x32xf32>
    %274 = arith.subf %273, %252 : vector<8x32xf32>
    %275 = arith.mulf %274, %252 : vector<8x32xf32>
    %276 = math.exp %275 : vector<8x32xf32>
    %277 = arith.mulf %272, %276 : vector<8x32xf32>
    %cst_101 = arith.constant 1.000000e+00 : f32
    %278 = vector.broadcast %cst_101 : f32 to vector<8x32xf32>
    %279 = arith.subf %278, %277 : vector<8x32xf32>
    %280 = arith.mulf %251, %279 : vector<8x32xf32>
    %cst_102 = arith.constant 1.000000e+00 : f32
    %281 = vector.broadcast %cst_102 : f32 to vector<8x32xf32>
    %282 = arith.addf %281, %280 : vector<8x32xf32>
    %283 = arith.mulf %244, %282 : vector<8x32xf32>
    %284 = vector.broadcast %207 : vector<8x1xf32> to vector<8x32xf32>
    %285 = arith.mulf %284, %283 : vector<8x32xf32>
    %c2_i32 = arith.constant 2 : i32
    %286 = vector.broadcast %c2_i32 : i32 to vector<8x1xi32>
    %287 = arith.cmpi eq, %81, %286 : vector<8x1xi32>
    %cst_103 = arith.constant 0.000000e+00 : f32
    %288 = vector.broadcast %cst_103 : f32 to vector<8x1xf32>
    %289 = arith.select %287, %95, %288 : vector<8x1xi1>, vector<8x1xf32>
    %c2_i32_104 = arith.constant 2 : i32
    %290 = vector.broadcast %c2_i32_104 : i32 to vector<8x1xi32>
    %291 = arith.cmpi eq, %93, %290 : vector<8x1xi32>
    %cst_105 = arith.constant 0.000000e+00 : f32
    %292 = vector.broadcast %cst_105 : f32 to vector<8x1xf32>
    %293 = arith.select %291, %96, %292 : vector<8x1xi1>, vector<8x1xf32>
    %294 = arith.addf %289, %293 : vector<8x1xf32>
    %c2_i32_106 = arith.constant 2 : i32
    %295 = vector.broadcast %c2_i32_106 : i32 to vector<8x1xi32>
    %296 = arith.cmpi eq, %81, %295 : vector<8x1xi32>
    %c2_i32_107 = arith.constant 2 : i32
    %297 = vector.broadcast %c2_i32_107 : i32 to vector<8x1xi32>
    %298 = arith.cmpi eq, %93, %297 : vector<8x1xi32>
    %299 = arith.ori %296, %298 : vector<8x1xi1>
    %300 = arith.extui %299 : vector<8x1xi1> to vector<8x1xi32>
    %301 = arith.sitofp %300 : vector<8x1xi32> to vector<8x1xf32>
    %302 = arith.mulf %301, %104 : vector<8x1xf32>
    %cst_108 = arith.constant dense<0.000000e+00> : vector<1xf32>
    %303 = vector.multi_reduction <add>, %302, %cst_108 [0] : vector<8x1xf32> to vector<1xf32>
    %304 = vector.shape_cast %303 : vector<1xf32> to vector<1x1xf32>
    %305 = vector.extract_strided_slice %109 {offsets = [0, 48], sizes = [8, 48], strides = [1, 1]} : vector<8x160xf32> to vector<8x48xf32>
    %cst_109 = arith.constant dense<0.000000e+00> : vector<8xf32>
    %306 = vector.multi_reduction <add>, %305, %cst_109 [1] : vector<8x48xf32> to vector<8xf32>
    %307 = vector.shape_cast %306 : vector<8xf32> to vector<8x1xf32>
    %cst_110 = arith.constant 0.020833334 : f32
    %308 = vector.broadcast %cst_110 : f32 to vector<8x1xf32>
    %309 = arith.mulf %307, %308 : vector<8x1xf32>
    %310 = arith.mulf %305, %305 : vector<8x48xf32>
    %cst_111 = arith.constant dense<0.000000e+00> : vector<8xf32>
    %311 = vector.multi_reduction <add>, %310, %cst_111 [1] : vector<8x48xf32> to vector<8xf32>
    %312 = vector.shape_cast %311 : vector<8xf32> to vector<8x1xf32>
    %cst_112 = arith.constant 0.020833334 : f32
    %313 = vector.broadcast %cst_112 : f32 to vector<8x1xf32>
    %314 = arith.mulf %312, %313 : vector<8x1xf32>
    %315 = arith.mulf %309, %309 : vector<8x1xf32>
    %316 = arith.subf %314, %315 : vector<8x1xf32>
    %cst_113 = arith.constant 9.99999974E-6 : f32
    %317 = vector.broadcast %cst_113 : f32 to vector<8x1xf32>
    %318 = arith.addf %316, %317 : vector<8x1xf32>
    %319 = math.rsqrt %318 : vector<8x1xf32>
    %320 = vector.broadcast %309 : vector<8x1xf32> to vector<8x48xf32>
    %321 = arith.subf %305, %320 : vector<8x48xf32>
    %322 = vector.broadcast %319 : vector<8x1xf32> to vector<8x48xf32>
    %323 = arith.mulf %321, %322 : vector<8x48xf32>
    %324 = vector.extract_strided_slice %110 {offsets = [0, 48], sizes = [1, 48], strides = [1, 1]} : vector<1x160xf32> to vector<1x48xf32>
    %325 = vector.broadcast %324 : vector<1x48xf32> to vector<8x48xf32>
    %326 = arith.mulf %323, %325 : vector<8x48xf32>
    %327 = vector.extract_strided_slice %111 {offsets = [0, 48], sizes = [1, 48], strides = [1, 1]} : vector<1x160xf32> to vector<1x48xf32>
    %328 = vector.broadcast %327 : vector<1x48xf32> to vector<8x48xf32>
    %329 = arith.addf %326, %328 : vector<8x48xf32>
    %cst_114 = arith.constant 5.000000e-01 : f32
    %330 = vector.broadcast %cst_114 : f32 to vector<8x48xf32>
    %331 = arith.mulf %330, %329 : vector<8x48xf32>
    %cst_115 = arith.constant 0.707106769 : f32
    %332 = vector.broadcast %cst_115 : f32 to vector<8x48xf32>
    %333 = arith.mulf %329, %332 : vector<8x48xf32>
    %cst_116 = arith.constant 0.000000e+00 : f32
    %334 = vector.broadcast %cst_116 : f32 to vector<8x48xf32>
    %335 = arith.cmpf oge, %333, %334 : vector<8x48xf32>
    %cst_117 = arith.constant 1.000000e+00 : f32
    %cst_118 = arith.constant -1.000000e+00 : f32
    %336 = vector.broadcast %cst_117 : f32 to vector<8x48xf32>
    %337 = vector.broadcast %cst_118 : f32 to vector<8x48xf32>
    %338 = arith.select %335, %336, %337 : vector<8x48xi1>, vector<8x48xf32>
    %339 = math.absf %333 : vector<8x48xf32>
    %cst_119 = arith.constant 0.327591091 : f32
    %340 = vector.broadcast %cst_119 : f32 to vector<8x48xf32>
    %341 = arith.mulf %340, %339 : vector<8x48xf32>
    %cst_120 = arith.constant 1.000000e+00 : f32
    %342 = vector.broadcast %cst_120 : f32 to vector<8x48xf32>
    %343 = arith.addf %342, %341 : vector<8x48xf32>
    %cst_121 = arith.constant 1.000000e+00 : f32
    %344 = vector.broadcast %cst_121 : f32 to vector<8x48xf32>
    %345 = arith.divf %344, %343 : vector<8x48xf32>
    %cst_122 = arith.constant 1.06140542 : f32
    %346 = vector.broadcast %cst_122 : f32 to vector<8x48xf32>
    %347 = arith.mulf %345, %346 : vector<8x48xf32>
    %cst_123 = arith.constant -1.45315206 : f32
    %348 = vector.broadcast %cst_123 : f32 to vector<8x48xf32>
    %349 = arith.addf %348, %347 : vector<8x48xf32>
    %350 = arith.mulf %345, %349 : vector<8x48xf32>
    %cst_124 = arith.constant 1.42141378 : f32
    %351 = vector.broadcast %cst_124 : f32 to vector<8x48xf32>
    %352 = arith.addf %351, %350 : vector<8x48xf32>
    %353 = arith.mulf %345, %352 : vector<8x48xf32>
    %cst_125 = arith.constant -0.284496725 : f32
    %354 = vector.broadcast %cst_125 : f32 to vector<8x48xf32>
    %355 = arith.addf %354, %353 : vector<8x48xf32>
    %356 = arith.mulf %345, %355 : vector<8x48xf32>
    %cst_126 = arith.constant 0.254829586 : f32
    %357 = vector.broadcast %cst_126 : f32 to vector<8x48xf32>
    %358 = arith.addf %357, %356 : vector<8x48xf32>
    %359 = arith.mulf %345, %358 : vector<8x48xf32>
    %cst_127 = arith.constant 0.000000e+00 : f32
    %360 = vector.broadcast %cst_127 : f32 to vector<8x48xf32>
    %361 = arith.subf %360, %339 : vector<8x48xf32>
    %362 = arith.mulf %361, %339 : vector<8x48xf32>
    %363 = math.exp %362 : vector<8x48xf32>
    %364 = arith.mulf %359, %363 : vector<8x48xf32>
    %cst_128 = arith.constant 1.000000e+00 : f32
    %365 = vector.broadcast %cst_128 : f32 to vector<8x48xf32>
    %366 = arith.subf %365, %364 : vector<8x48xf32>
    %367 = arith.mulf %338, %366 : vector<8x48xf32>
    %cst_129 = arith.constant 1.000000e+00 : f32
    %368 = vector.broadcast %cst_129 : f32 to vector<8x48xf32>
    %369 = arith.addf %368, %367 : vector<8x48xf32>
    %370 = arith.mulf %331, %369 : vector<8x48xf32>
    %371 = vector.broadcast %294 : vector<8x1xf32> to vector<8x48xf32>
    %372 = arith.mulf %371, %370 : vector<8x48xf32>
    %c3_i32 = arith.constant 3 : i32
    %373 = vector.broadcast %c3_i32 : i32 to vector<8x1xi32>
    %374 = arith.cmpi eq, %81, %373 : vector<8x1xi32>
    %cst_130 = arith.constant 0.000000e+00 : f32
    %375 = vector.broadcast %cst_130 : f32 to vector<8x1xf32>
    %376 = arith.select %374, %95, %375 : vector<8x1xi1>, vector<8x1xf32>
    %c3_i32_131 = arith.constant 3 : i32
    %377 = vector.broadcast %c3_i32_131 : i32 to vector<8x1xi32>
    %378 = arith.cmpi eq, %93, %377 : vector<8x1xi32>
    %cst_132 = arith.constant 0.000000e+00 : f32
    %379 = vector.broadcast %cst_132 : f32 to vector<8x1xf32>
    %380 = arith.select %378, %96, %379 : vector<8x1xi1>, vector<8x1xf32>
    %381 = arith.addf %376, %380 : vector<8x1xf32>
    %c3_i32_133 = arith.constant 3 : i32
    %382 = vector.broadcast %c3_i32_133 : i32 to vector<8x1xi32>
    %383 = arith.cmpi eq, %81, %382 : vector<8x1xi32>
    %c3_i32_134 = arith.constant 3 : i32
    %384 = vector.broadcast %c3_i32_134 : i32 to vector<8x1xi32>
    %385 = arith.cmpi eq, %93, %384 : vector<8x1xi32>
    %386 = arith.ori %383, %385 : vector<8x1xi1>
    %387 = arith.extui %386 : vector<8x1xi1> to vector<8x1xi32>
    %388 = arith.sitofp %387 : vector<8x1xi32> to vector<8x1xf32>
    %389 = arith.mulf %388, %104 : vector<8x1xf32>
    %cst_135 = arith.constant dense<0.000000e+00> : vector<1xf32>
    %390 = vector.multi_reduction <add>, %389, %cst_135 [0] : vector<8x1xf32> to vector<1xf32>
    %391 = vector.shape_cast %390 : vector<1xf32> to vector<1x1xf32>
    %392 = vector.extract_strided_slice %109 {offsets = [0, 96], sizes = [8, 64], strides = [1, 1]} : vector<8x160xf32> to vector<8x64xf32>
    %cst_136 = arith.constant dense<0.000000e+00> : vector<8xf32>
    %393 = vector.multi_reduction <add>, %392, %cst_136 [1] : vector<8x64xf32> to vector<8xf32>
    %394 = vector.shape_cast %393 : vector<8xf32> to vector<8x1xf32>
    %cst_137 = arith.constant 1.562500e-02 : f32
    %395 = vector.broadcast %cst_137 : f32 to vector<8x1xf32>
    %396 = arith.mulf %394, %395 : vector<8x1xf32>
    %397 = arith.mulf %392, %392 : vector<8x64xf32>
    %cst_138 = arith.constant dense<0.000000e+00> : vector<8xf32>
    %398 = vector.multi_reduction <add>, %397, %cst_138 [1] : vector<8x64xf32> to vector<8xf32>
    %399 = vector.shape_cast %398 : vector<8xf32> to vector<8x1xf32>
    %cst_139 = arith.constant 1.562500e-02 : f32
    %400 = vector.broadcast %cst_139 : f32 to vector<8x1xf32>
    %401 = arith.mulf %399, %400 : vector<8x1xf32>
    %402 = arith.mulf %396, %396 : vector<8x1xf32>
    %403 = arith.subf %401, %402 : vector<8x1xf32>
    %cst_140 = arith.constant 9.99999974E-6 : f32
    %404 = vector.broadcast %cst_140 : f32 to vector<8x1xf32>
    %405 = arith.addf %403, %404 : vector<8x1xf32>
    %406 = math.rsqrt %405 : vector<8x1xf32>
    %407 = vector.broadcast %396 : vector<8x1xf32> to vector<8x64xf32>
    %408 = arith.subf %392, %407 : vector<8x64xf32>
    %409 = vector.broadcast %406 : vector<8x1xf32> to vector<8x64xf32>
    %410 = arith.mulf %408, %409 : vector<8x64xf32>
    %411 = vector.extract_strided_slice %110 {offsets = [0, 96], sizes = [1, 64], strides = [1, 1]} : vector<1x160xf32> to vector<1x64xf32>
    %412 = vector.broadcast %411 : vector<1x64xf32> to vector<8x64xf32>
    %413 = arith.mulf %410, %412 : vector<8x64xf32>
    %414 = vector.extract_strided_slice %111 {offsets = [0, 96], sizes = [1, 64], strides = [1, 1]} : vector<1x160xf32> to vector<1x64xf32>
    %415 = vector.broadcast %414 : vector<1x64xf32> to vector<8x64xf32>
    %416 = arith.addf %413, %415 : vector<8x64xf32>
    %cst_141 = arith.constant 5.000000e-01 : f32
    %417 = vector.broadcast %cst_141 : f32 to vector<8x64xf32>
    %418 = arith.mulf %417, %416 : vector<8x64xf32>
    %cst_142 = arith.constant 0.707106769 : f32
    %419 = vector.broadcast %cst_142 : f32 to vector<8x64xf32>
    %420 = arith.mulf %416, %419 : vector<8x64xf32>
    %cst_143 = arith.constant 0.000000e+00 : f32
    %421 = vector.broadcast %cst_143 : f32 to vector<8x64xf32>
    %422 = arith.cmpf oge, %420, %421 : vector<8x64xf32>
    %cst_144 = arith.constant 1.000000e+00 : f32
    %cst_145 = arith.constant -1.000000e+00 : f32
    %423 = vector.broadcast %cst_144 : f32 to vector<8x64xf32>
    %424 = vector.broadcast %cst_145 : f32 to vector<8x64xf32>
    %425 = arith.select %422, %423, %424 : vector<8x64xi1>, vector<8x64xf32>
    %426 = math.absf %420 : vector<8x64xf32>
    %cst_146 = arith.constant 0.327591091 : f32
    %427 = vector.broadcast %cst_146 : f32 to vector<8x64xf32>
    %428 = arith.mulf %427, %426 : vector<8x64xf32>
    %cst_147 = arith.constant 1.000000e+00 : f32
    %429 = vector.broadcast %cst_147 : f32 to vector<8x64xf32>
    %430 = arith.addf %429, %428 : vector<8x64xf32>
    %cst_148 = arith.constant 1.000000e+00 : f32
    %431 = vector.broadcast %cst_148 : f32 to vector<8x64xf32>
    %432 = arith.divf %431, %430 : vector<8x64xf32>
    %cst_149 = arith.constant 1.06140542 : f32
    %433 = vector.broadcast %cst_149 : f32 to vector<8x64xf32>
    %434 = arith.mulf %432, %433 : vector<8x64xf32>
    %cst_150 = arith.constant -1.45315206 : f32
    %435 = vector.broadcast %cst_150 : f32 to vector<8x64xf32>
    %436 = arith.addf %435, %434 : vector<8x64xf32>
    %437 = arith.mulf %432, %436 : vector<8x64xf32>
    %cst_151 = arith.constant 1.42141378 : f32
    %438 = vector.broadcast %cst_151 : f32 to vector<8x64xf32>
    %439 = arith.addf %438, %437 : vector<8x64xf32>
    %440 = arith.mulf %432, %439 : vector<8x64xf32>
    %cst_152 = arith.constant -0.284496725 : f32
    %441 = vector.broadcast %cst_152 : f32 to vector<8x64xf32>
    %442 = arith.addf %441, %440 : vector<8x64xf32>
    %443 = arith.mulf %432, %442 : vector<8x64xf32>
    %cst_153 = arith.constant 0.254829586 : f32
    %444 = vector.broadcast %cst_153 : f32 to vector<8x64xf32>
    %445 = arith.addf %444, %443 : vector<8x64xf32>
    %446 = arith.mulf %432, %445 : vector<8x64xf32>
    %cst_154 = arith.constant 0.000000e+00 : f32
    %447 = vector.broadcast %cst_154 : f32 to vector<8x64xf32>
    %448 = arith.subf %447, %426 : vector<8x64xf32>
    %449 = arith.mulf %448, %426 : vector<8x64xf32>
    %450 = math.exp %449 : vector<8x64xf32>
    %451 = arith.mulf %446, %450 : vector<8x64xf32>
    %cst_155 = arith.constant 1.000000e+00 : f32
    %452 = vector.broadcast %cst_155 : f32 to vector<8x64xf32>
    %453 = arith.subf %452, %451 : vector<8x64xf32>
    %454 = arith.mulf %425, %453 : vector<8x64xf32>
    %cst_156 = arith.constant 1.000000e+00 : f32
    %455 = vector.broadcast %cst_156 : f32 to vector<8x64xf32>
    %456 = arith.addf %455, %454 : vector<8x64xf32>
    %457 = arith.mulf %418, %456 : vector<8x64xf32>
    %458 = vector.broadcast %381 : vector<8x1xf32> to vector<8x64xf32>
    %459 = arith.mulf %458, %457 : vector<8x64xf32>
    %460 = tpu.concatenate %198, %285, %372, %459, %120, %207, %294, %381 in 1 : vector<8x16xf32>, vector<8x32xf32>, vector<8x48xf32>, vector<8x64xf32>, vector<8x1xf32>, vector<8x1xf32>, vector<8x1xf32>, vector<8x1xf32> -> vector<8x164xf32>
    %461 = arith.truncf %460 : vector<8x164xf32> to vector<8x164xbf16>
    %c0_157 = arith.constant 0 : index
    %c0_158 = arith.constant 0 : index
    %462 = vector.load %arg7[%c0_157, %c0_158] : memref<164x32xbf16, #tpu.memory_space<vmem>>, vector<164x32xbf16>
    %cst_159 = arith.constant dense<0.000000e+00> : vector<8x32xf32>
    %463 = tpu.matmul %461, %462, %cst_159 {dimension_numbers = #tpu.dot_dimension_numbers<[1], [0], [0], [1], [0, 0, 1, 1], [], []>} : vector<8x164xbf16>, vector<164x32xbf16>, vector<8x32xf32> -> vector<8x32xf32>
    %c0_160 = arith.constant 0 : index
    %c0_161 = arith.constant 0 : index
    %464 = vector.load %arg13[%c0_160, %c0_161] : memref<8x32xf32, #tpu.memory_space<vmem>>, vector<8x32xf32>
    tpu.vector_store %arg13[%c0_160, %c0_161], %463 {strides = array<i32>} : memref<8x32xf32, #tpu.memory_space<vmem>>, vector<8x32xf32>,
    %465 = arith.mulf %63, %104 : vector<8x1xf32>
    %cst_162 = arith.constant dense<0.000000e+00> : vector<1xf32>
    %466 = vector.multi_reduction <add>, %465, %cst_162 [0] : vector<8x1xf32> to vector<1xf32>
    %467 = vector.shape_cast %466 : vector<1xf32> to vector<1x1xf32>
    %468 = tpu.iota {dimensions = array<i32: 1>} : vector<1x128xi32>
    %c4_i32_163 = arith.constant 4 : i32
    %469 = vector.broadcast %c4_i32_163 : i32 to vector<1x128xi32>
    %470 = arith.cmpi eq, %468, %469 : vector<1x128xi32>
    %cst_164 = arith.constant 0.000000e+00 : f32
    %471 = vector.shape_cast %467 : vector<1x1xf32> to vector<1x1xf32>
    %472 = vector.broadcast %471 : vector<1x1xf32> to vector<1x128xf32>
    %473 = vector.broadcast %cst_164 : f32 to vector<1x128xf32>
    %474 = arith.select %470, %472, %473 : vector<1x128xi1>, vector<1x128xf32>
    %c0_i32_165 = arith.constant 0 : i32
    %475 = vector.broadcast %c0_i32_165 : i32 to vector<1x128xi32>
    %476 = arith.cmpi eq, %468, %475 : vector<1x128xi32>
    %cst_166 = arith.constant 0.000000e+00 : f32
    %477 = vector.shape_cast %130 : vector<1x1xf32> to vector<1x1xf32>
    %478 = vector.broadcast %477 : vector<1x1xf32> to vector<1x128xf32>
    %479 = vector.broadcast %cst_166 : f32 to vector<1x128xf32>
    %480 = arith.select %476, %478, %479 : vector<1x128xi1>, vector<1x128xf32>
    %481 = arith.addf %474, %480 : vector<1x128xf32>
    %c1_i32_167 = arith.constant 1 : i32
    %482 = vector.broadcast %c1_i32_167 : i32 to vector<1x128xi32>
    %483 = arith.cmpi eq, %468, %482 : vector<1x128xi32>
    %cst_168 = arith.constant 0.000000e+00 : f32
    %484 = vector.shape_cast %217 : vector<1x1xf32> to vector<1x1xf32>
    %485 = vector.broadcast %484 : vector<1x1xf32> to vector<1x128xf32>
    %486 = vector.broadcast %cst_168 : f32 to vector<1x128xf32>
    %487 = arith.select %483, %485, %486 : vector<1x128xi1>, vector<1x128xf32>
    %488 = arith.addf %481, %487 : vector<1x128xf32>
    %c2_i32_169 = arith.constant 2 : i32
    %489 = vector.broadcast %c2_i32_169 : i32 to vector<1x128xi32>
    %490 = arith.cmpi eq, %468, %489 : vector<1x128xi32>
    %cst_170 = arith.constant 0.000000e+00 : f32
    %491 = vector.shape_cast %304 : vector<1x1xf32> to vector<1x1xf32>
    %492 = vector.broadcast %491 : vector<1x1xf32> to vector<1x128xf32>
    %493 = vector.broadcast %cst_170 : f32 to vector<1x128xf32>
    %494 = arith.select %490, %492, %493 : vector<1x128xi1>, vector<1x128xf32>
    %495 = arith.addf %488, %494 : vector<1x128xf32>
    %c3_i32_171 = arith.constant 3 : i32
    %496 = vector.broadcast %c3_i32_171 : i32 to vector<1x128xi32>
    %497 = arith.cmpi eq, %468, %496 : vector<1x128xi32>
    %cst_172 = arith.constant 0.000000e+00 : f32
    %498 = vector.shape_cast %391 : vector<1x1xf32> to vector<1x1xf32>
    %499 = vector.broadcast %498 : vector<1x1xf32> to vector<1x128xf32>
    %500 = vector.broadcast %cst_172 : f32 to vector<1x128xf32>
    %501 = arith.select %497, %499, %500 : vector<1x128xi1>, vector<1x128xf32>
    %502 = arith.addf %495, %501 : vector<1x128xf32>
    %503 = vector.shape_cast %502 : vector<1x128xf32> to vector<1x1x128xf32>
    %504 = vector.shape_cast %503 : vector<1x1x128xf32> to vector<1x1x128xf32>
    %505 = vector.broadcast %504 : vector<1x1x128xf32> to vector<1x8x128xf32>
    %c0_173 = arith.constant 0 : index
    %c0_174 = arith.constant 0 : index
    %c0_175 = arith.constant 0 : index
    %506 = vector.load %arg14[%c0_173, %c0_174, %c0_175] : memref<1x8x128xf32, #tpu.memory_space<vmem>>, vector<1x8x128xf32>
    tpu.vector_store %arg14[%c0_173, %c0_174, %c0_175], %505 {strides = array<i32>} : memref<1x8x128xf32, #tpu.memory_space<vmem>>, vector<1x8x128xf32>,
    return
  }
  func.func @transform_0(%arg0: i32) -> (i32, i32) {
    %c0_i32 = arith.constant 0 : i32
    %c0_i32_0 = arith.constant 0 : i32
    return %arg0, %c0_i32 : i32, i32
  }
  func.func @transform_1(%arg0: i32) -> (i32, i32) {
    %c0_i32 = arith.constant 0 : i32
    %c0_i32_0 = arith.constant 0 : i32
    return %arg0, %c0_i32 : i32, i32
  }
  func.func @transform_2(%arg0: i32) -> (i32, i32) {
    %c0_i32 = arith.constant 0 : i32
    %c0_i32_0 = arith.constant 0 : i32
    %c0_i32_1 = arith.constant 0 : i32
    return %c0_i32, %c0_i32_0 : i32, i32
  }
  func.func @transform_3(%arg0: i32) -> (i32, i32) {
    %c0_i32 = arith.constant 0 : i32
    %c0_i32_0 = arith.constant 0 : i32
    %c0_i32_1 = arith.constant 0 : i32
    return %c0_i32, %c0_i32_0 : i32, i32
  }
  func.func @transform_4(%arg0: i32) -> (i32, i32) {
    %c0_i32 = arith.constant 0 : i32
    %c0_i32_0 = arith.constant 0 : i32
    %c0_i32_1 = arith.constant 0 : i32
    return %c0_i32, %c0_i32_0 : i32, i32
  }
  func.func @transform_5(%arg0: i32) -> (i32, i32) {
    %c0_i32 = arith.constant 0 : i32
    %c0_i32_0 = arith.constant 0 : i32
    %c0_i32_1 = arith.constant 0 : i32
    return %c0_i32, %c0_i32_0 : i32, i32
  }
  func.func @transform_6(%arg0: i32) -> (i32, i32) {
    %c0_i32 = arith.constant 0 : i32
    %c0_i32_0 = arith.constant 0 : i32
    %c0_i32_1 = arith.constant 0 : i32
    return %c0_i32, %c0_i32_0 : i32, i32
  }
  func.func @transform_7(%arg0: i32) -> (i32, i32) {
    %c0_i32 = arith.constant 0 : i32
    %c0_i32_0 = arith.constant 0 : i32
    %c0_i32_1 = arith.constant 0 : i32
    return %c0_i32, %c0_i32_0 : i32, i32
  }
  func.func @transform_8(%arg0: i32) -> (i32, i32) {
    %c0_i32 = arith.constant 0 : i32
    %c0_i32_0 = arith.constant 0 : i32
    %c0_i32_1 = arith.constant 0 : i32
    return %c0_i32, %c0_i32_0 : i32, i32
  }
  func.func @transform_9(%arg0: i32) -> (i32, i32) {
    %c0_i32 = arith.constant 0 : i32
    %c0_i32_0 = arith.constant 0 : i32
    %c0_i32_1 = arith.constant 0 : i32
    return %c0_i32, %c0_i32_0 : i32, i32
  }
  func.func @transform_10(%arg0: i32) -> (i32, i32) {
    %c0_i32 = arith.constant 0 : i32
    %c0_i32_0 = arith.constant 0 : i32
    %c0_i32_1 = arith.constant 0 : i32
    return %c0_i32, %c0_i32_0 : i32, i32
  }
  func.func @transform_11(%arg0: i32) -> (i32, i32) {
    %c0_i32 = arith.constant 0 : i32
    %c0_i32_0 = arith.constant 0 : i32
    %c0_i32_1 = arith.constant 0 : i32
    return %c0_i32, %c0_i32_0 : i32, i32
  }
  func.func @transform_12(%arg0: i32) -> (i32, i32) {
    %c0_i32 = arith.constant 0 : i32
    %c0_i32_0 = arith.constant 0 : i32
    return %arg0, %c0_i32 : i32, i32
  }
  func.func @transform_13(%arg0: i32) -> (i32, i32, i32) {
    %c0_i32 = arith.constant 0 : i32
    %c0_i32_0 = arith.constant 0 : i32
    %c0_i32_1 = arith.constant 0 : i32
    return %arg0, %c0_i32, %c0_i32_0 : i32, i32, i32
  }
}

</mosaic_0001>

<llo_original>
// kernel: tpu_custom_call.1
$region0: #{tpu_custom_call.1}
  #allocation0 [shape = 'u32[]', space=smem, size = 0x4, offset = 0x4, fixed_abs, tag = 'smem constant byte address 0x4 - core index']
  #allocation1 [shape = 'u32[144,128]{1,0:T(1,128)}', space=vmem, size = 0x12000, scoped, tag = 'internal scratch']
  %s0 = inlined_call_operand.vmem [shape: bf16[16,32], index: 0, kind: input, shape index: {}]
  %s1 = inlined_call_operand.vmem [shape: bf16[16,8], index: 1, kind: input, shape index: {}]
  %s2 = inlined_call_operand.vmem [shape: bf16[32,160], index: 2, kind: input, shape index: {}]
  %s3 = inlined_call_operand.vmem [shape: f32[1,160], index: 3, kind: input, shape index: {}]
  %s4 = inlined_call_operand.vmem [shape: f32[1,160], index: 4, kind: input, shape index: {}]
  %s5 = inlined_call_operand.vmem [shape: f32[1,160], index: 5, kind: input, shape index: {}]
  %s6 = inlined_call_operand.vmem [shape: bf16[164,32], index: 6, kind: input, shape index: {}]
  %s7 = inlined_call_operand.vmem [shape: bf16[32,24], index: 7, kind: input, shape index: {}]
  %s8 = inlined_call_operand.vmem [shape: bf16[8,24], index: 8, kind: input, shape index: {}]
  %s9 = inlined_call_operand.vmem [shape: f32[1,24], index: 9, kind: input, shape index: {}]
  %s10 = inlined_call_operand.vmem [shape: bf16[24,5], index: 10, kind: input, shape index: {}]
  %s11 = inlined_call_operand.vmem [shape: f32[1,5], index: 11, kind: input, shape index: {}]
  %s12 = inlined_call_operand.hbm [shape: f32[16,32], index: 12, kind: output, shape index: {0}]
  %s13 = inlined_call_operand.hbm [shape: f32[2,8,128], index: 13, kind: output, shape index: {1}]
  %14 = xla_tuple %s12, %s13
  %s15 = sld [smem:[#allocation0]]
  $region89: #{tpu_custom_call.1} parent=0
    _
  %s17 = ssub.s32 1, %s15
  %s18 = scalar_select 0, %s17, %s15
  $region1: #{tpu_custom_call.1} parent=0
    #allocation2 [shape = 'u8[8192]{0}', space=vmem, size = 0x2000, scoped, tag = 'output window, operand 0']
    #allocation3 [shape = 's32[2]{0}', space=sflag, size = 0x8, scoped, tag = 'scoped memory for tpu_custom_call.1']
    #allocation4 [shape = 'u8[8192]{0}', space=vmem, size = 0x2000, scoped, tag = 'output window, operand 1']
    #allocation5 [shape = 's32[2]{0}', space=sflag, size = 0x8, scoped, tag = 'scoped memory for tpu_custom_call.1']
    %19 = vsyncpa [#allocation3], 0
    %s20 = scalar_lea.sflag [#allocation3], 1
    %21 = vsyncpa %s20, 0
    %22 = vsyncpa [#allocation5], 0
    %s23 = scalar_lea.sflag [#allocation5], 1
    %24 = vsyncpa %s23, 0
    loop: start=0, step=1, limit=4
    $region2: #{tpu_custom_call.1} parent=1 // loop_pre_header
      _
    $region3: #{tpu_custom_call.1} parent=1 // loop_header
      %s26 = sphi 0, %s30
      %p27 = scmp.ge.s32.totalorder %s26, 4
      %s36 = sphi 0, %s38
      %s39 = sphi 0, %s36
      %s40 = sphi 0, %s39
      %s56 = sphi 0, %s40
      %s62 = sphi 0, %s64
      %s65 = sphi 0, %s62
      %s66 = sphi 0, %s65
      %s82 = sphi 0, %s66
      %s86 = sphi 0, %s86
      %s88 = sphi 0, %s86
      %s89 = sphi 0, %s88
      %s103 = sphi 0, %s89
      %s107 = sphi 0, %s107
      %s109 = sphi 0, %s107
      %s110 = sphi 0, %s109
      %s124 = sphi 0, %s110
      %s128 = sphi 0, %s128
      %s130 = sphi 0, %s128
      %s131 = sphi 0, %s130
      %s145 = sphi 0, %s131
      %s149 = sphi 0, %s149
      %s151 = sphi 0, %s149
      %s152 = sphi 0, %s151
      %s166 = sphi 0, %s152
      %s170 = sphi 0, %s170
      %s172 = sphi 0, %s170
      %s173 = sphi 0, %s172
      %s187 = sphi 0, %s173
      %s191 = sphi 0, %s191
      %s193 = sphi 0, %s191
      %s194 = sphi 0, %s193
      %s208 = sphi 0, %s194
      %s212 = sphi 0, %s212
      %s214 = sphi 0, %s212
      %s215 = sphi 0, %s214
      %s229 = sphi 0, %s215
      %s233 = sphi 0, %s233
      %s235 = sphi 0, %s233
      %s236 = sphi 0, %s235
      %s250 = sphi 0, %s236
      %s254 = sphi 0, %s254
      %s256 = sphi 0, %s254
      %s257 = sphi 0, %s256
      %s271 = sphi 0, %s257
      %s275 = sphi 0, %s275
      %s277 = sphi 0, %s275
      %s278 = sphi 0, %s277
      %s292 = sphi 0, %s278
      %s298 = sphi 0, %s300
      %s301 = sphi 0, %s298
      %s302 = sphi 0, %s301
      %s318 = sphi 0, %s302
      %s324 = sphi 0, %s326
      %s327 = sphi 0, %s324
      %s328 = sphi 0, %s327
      %s344 = sphi 0, %s328
    $region4: #{tpu_custom_call.1} parent=1 // loop_header_branch
      %29 = sbr.rel (%p27) target = $region8
    $region5: #{tpu_custom_call.1} parent=1 // loop_body
      %s31 = ssub.s32 %s26, 1
      %s32 = ssub.s32 %s26, 2
      %s33 = sadd.s32 %s26, 1
      %s34 = ssub.s32 %s26, %s33
      %p35 = scmp.eq.s32.totalorder %s34, 0
      %s37 = sadd.s32 %s36, 1
      %s38 = scalar_select %p35, %s36, %s37
      %p41 = pneg %p35
      %p42 = scmp.eq.s32.totalorder %s26, 1
      %p43 = por %p41, %p42
      %p44 = scmp.ne.s32.totalorder %s36, %s39
      %p45 = scmp.eq.s32.totalorder %s26, 0
      %p46 = por %p44, %p45
      %p47 = scmp.ne.s32.totalorder %s36, %s39
      %p48 = scmp.eq.s32.totalorder %s31, 1
      %p49 = por %p47, %p48
      %p50 = scmp.ne.s32.totalorder %s39, %s40
      %p51 = scmp.eq.s32.totalorder %s31, 0
      %p52 = por %p50, %p51
      %p53 = scmp.ne.s32.totalorder %s39, %s40
      %p54 = scmp.eq.s32.totalorder %s32, 1
      %p55 = por %p53, %p54
      %p57 = scmp.ne.s32.totalorder %s40, %s56
      %p58 = scmp.eq.s32.totalorder %s32, 0
      %p59 = por %p57, %p58
      %s60 = ssub.s32 %s26, %s33
      %p61 = scmp.eq.s32.totalorder %s60, 0
      %s63 = sadd.s32 %s62, 1
      %s64 = scalar_select %p61, %s62, %s63
      %p67 = pneg %p61
      %p68 = scmp.eq.s32.totalorder %s26, 1
      %p69 = por %p67, %p68
      %p70 = scmp.ne.s32.totalorder %s62, %s65
      %p71 = scmp.eq.s32.totalorder %s26, 0
      %p72 = por %p70, %p71
      %p73 = scmp.ne.s32.totalorder %s62, %s65
      %p74 = scmp.eq.s32.totalorder %s31, 1
      %p75 = por %p73, %p74
      %p76 = scmp.ne.s32.totalorder %s65, %s66
      %p77 = scmp.eq.s32.totalorder %s31, 0
      %p78 = por %p76, %p77
      %p79 = scmp.ne.s32.totalorder %s65, %s66
      %p80 = scmp.eq.s32.totalorder %s32, 1
      %p81 = por %p79, %p80
      %p83 = scmp.ne.s32.totalorder %s66, %s82
      %p84 = scmp.eq.s32.totalorder %s32, 0
      %p85 = por %p83, %p84
      %s87 = sadd.s32 %s86, 1
      %p90 = scmp.eq.s32.totalorder %s26, 1
      %p91 = scmp.ne.s32.totalorder %s86, %s88
      %p92 = scmp.eq.s32.totalorder %s26, 0
      %p93 = por %p91, %p92
      %p94 = scmp.ne.s32.totalorder %s86, %s88
      %p95 = scmp.eq.s32.totalorder %s31, 1
      %p96 = por %p94, %p95
      %p97 = scmp.ne.s32.totalorder %s88, %s89
      %p98 = scmp.eq.s32.totalorder %s31, 0
      %p99 = por %p97, %p98
      %p100 = scmp.ne.s32.totalorder %s88, %s89
      %p101 = scmp.eq.s32.totalorder %s32, 1
      %p102 = por %p100, %p101
      %p104 = scmp.ne.s32.totalorder %s89, %s103
      %p105 = scmp.eq.s32.totalorder %s32, 0
      %p106 = por %p104, %p105
      %s108 = sadd.s32 %s107, 1
      %p111 = scmp.eq.s32.totalorder %s26, 1
      %p112 = scmp.ne.s32.totalorder %s107, %s109
      %p113 = scmp.eq.s32.totalorder %s26, 0
      %p114 = por %p112, %p113
      %p115 = scmp.ne.s32.totalorder %s107, %s109
      %p116 = scmp.eq.s32.totalorder %s31, 1
      %p117 = por %p115, %p116
      %p118 = scmp.ne.s32.totalorder %s109, %s110
      %p119 = scmp.eq.s32.totalorder %s31, 0
      %p120 = por %p118, %p119
      %p121 = scmp.ne.s32.totalorder %s109, %s110
      %p122 = scmp.eq.s32.totalorder %s32, 1
      %p123 = por %p121, %p122
      %p125 = scmp.ne.s32.totalorder %s110, %s124
      %p126 = scmp.eq.s32.totalorder %s32, 0
      %p127 = por %p125, %p126
      %s129 = sadd.s32 %s128, 1
      %p132 = scmp.eq.s32.totalorder %s26, 1
      %p133 = scmp.ne.s32.totalorder %s128, %s130
      %p134 = scmp.eq.s32.totalorder %s26, 0
      %p135 = por %p133, %p134
      %p136 = scmp.ne.s32.totalorder %s128, %s130
      %p137 = scmp.eq.s32.totalorder %s31, 1
      %p138 = por %p136, %p137
      %p139 = scmp.ne.s32.totalorder %s130, %s131
      %p140 = scmp.eq.s32.totalorder %s31, 0
      %p141 = por %p139, %p140
      %p142 = scmp.ne.s32.totalorder %s130, %s131
      %p143 = scmp.eq.s32.totalorder %s32, 1
      %p144 = por %p142, %p143
      %p146 = scmp.ne.s32.totalorder %s131, %s145
      %p147 = scmp.eq.s32.totalorder %s32, 0
      %p148 = por %p146, %p147
      %s150 = sadd.s32 %s149, 1
      %p153 = scmp.eq.s32.totalorder %s26, 1
      %p154 = scmp.ne.s32.totalorder %s149, %s151
      %p155 = scmp.eq.s32.totalorder %s26, 0
      %p156 = por %p154, %p155
      %p157 = scmp.ne.s32.totalorder %s149, %s151
      %p158 = scmp.eq.s32.totalorder %s31, 1
      %p159 = por %p157, %p158
      %p160 = scmp.ne.s32.totalorder %s151, %s152
      %p161 = scmp.eq.s32.totalorder %s31, 0
      %p162 = por %p160, %p161
      %p163 = scmp.ne.s32.totalorder %s151, %s152
      %p164 = scmp.eq.s32.totalorder %s32, 1
      %p165 = por %p163, %p164
      %p167 = scmp.ne.s32.totalorder %s152, %s166
      %p168 = scmp.eq.s32.totalorder %s32, 0
      %p169 = por %p167, %p168
      %s171 = sadd.s32 %s170, 1
      %p174 = scmp.eq.s32.totalorder %s26, 1
      %p175 = scmp.ne.s32.totalorder %s170, %s172
      %p176 = scmp.eq.s32.totalorder %s26, 0
      %p177 = por %p175, %p176
      %p178 = scmp.ne.s32.totalorder %s170, %s172
      %p179 = scmp.eq.s32.totalorder %s31, 1
      %p180 = por %p178, %p179
      %p181 = scmp.ne.s32.totalorder %s172, %s173
      %p182 = scmp.eq.s32.totalorder %s31, 0
      %p183 = por %p181, %p182
      %p184 = scmp.ne.s32.totalorder %s172, %s173
      %p185 = scmp.eq.s32.totalorder %s32, 1
      %p186 = por %p184, %p185
      %p188 = scmp.ne.s32.totalorder %s173, %s187
      %p189 = scmp.eq.s32.totalorder %s32, 0
      %p190 = por %p188, %p189
      %s192 = sadd.s32 %s191, 1
      %p195 = scmp.eq.s32.totalorder %s26, 1
      %p196 = scmp.ne.s32.totalorder %s191, %s193
      %p197 = scmp.eq.s32.totalorder %s26, 0
      %p198 = por %p196, %p197
      %p199 = scmp.ne.s32.totalorder %s191, %s193
      %p200 = scmp.eq.s32.totalorder %s31, 1
      %p201 = por %p199, %p200
      %p202 = scmp.ne.s32.totalorder %s193, %s194
      %p203 = scmp.eq.s32.totalorder %s31, 0
      %p204 = por %p202, %p203
      %p205 = scmp.ne.s32.totalorder %s193, %s194
      %p206 = scmp.eq.s32.totalorder %s32, 1
      %p207 = por %p205, %p206
      %p209 = scmp.ne.s32.totalorder %s194, %s208
      %p210 = scmp.eq.s32.totalorder %s32, 0
      %p211 = por %p209, %p210
      %s213 = sadd.s32 %s212, 1
      %p216 = scmp.eq.s32.totalorder %s26, 1
      %p217 = scmp.ne.s32.totalorder %s212, %s214
      %p218 = scmp.eq.s32.totalorder %s26, 0
      %p219 = por %p217, %p218
      %p220 = scmp.ne.s32.totalorder %s212, %s214
      %p221 = scmp.eq.s32.totalorder %s31, 1
      %p222 = por %p220, %p221
      %p223 = scmp.ne.s32.totalorder %s214, %s215
      %p224 = scmp.eq.s32.totalorder %s31, 0
      %p225 = por %p223, %p224
      %p226 = scmp.ne.s32.totalorder %s214, %s215
      %p227 = scmp.eq.s32.totalorder %s32, 1
      %p228 = por %p226, %p227
      %p230 = scmp.ne.s32.totalorder %s215, %s229
      %p231 = scmp.eq.s32.totalorder %s32, 0
      %p232 = por %p230, %p231
      %s234 = sadd.s32 %s233, 1
      %p237 = scmp.eq.s32.totalorder %s26, 1
      %p238 = scmp.ne.s32.totalorder %s233, %s235
      %p239 = scmp.eq.s32.totalorder %s26, 0
      %p240 = por %p238, %p239
      %p241 = scmp.ne.s32.totalorder %s233, %s235
      %p242 = scmp.eq.s32.totalorder %s31, 1
      %p243 = por %p241, %p242
      %p244 = scmp.ne.s32.totalorder %s235, %s236
      %p245 = scmp.eq.s32.totalorder %s31, 0
      %p246 = por %p244, %p245
      %p247 = scmp.ne.s32.totalorder %s235, %s236
      %p248 = scmp.eq.s32.totalorder %s32, 1
      %p249 = por %p247, %p248
      %p251 = scmp.ne.s32.totalorder %s236, %s250
      %p252 = scmp.eq.s32.totalorder %s32, 0
      %p253 = por %p251, %p252
      %s255 = sadd.s32 %s254, 1
      %p258 = scmp.eq.s32.totalorder %s26, 1
      %p259 = scmp.ne.s32.totalorder %s254, %s256
      %p260 = scmp.eq.s32.totalorder %s26, 0
      %p261 = por %p259, %p260
      %p262 = scmp.ne.s32.totalorder %s254, %s256
      %p263 = scmp.eq.s32.totalorder %s31, 1
      %p264 = por %p262, %p263
      %p265 = scmp.ne.s32.totalorder %s256, %s257
      %p266 = scmp.eq.s32.totalorder %s31, 0
      %p267 = por %p265, %p266
      %p268 = scmp.ne.s32.totalorder %s256, %s257
      %p269 = scmp.eq.s32.totalorder %s32, 1
      %p270 = por %p268, %p269
      %p272 = scmp.ne.s32.totalorder %s257, %s271
      %p273 = scmp.eq.s32.totalorder %s32, 0
      %p274 = por %p272, %p273
      %s276 = sadd.s32 %s275, 1
      %p279 = scmp.eq.s32.totalorder %s26, 1
      %p280 = scmp.ne.s32.totalorder %s275, %s277
      %p281 = scmp.eq.s32.totalorder %s26, 0
      %p282 = por %p280, %p281
      %p283 = scmp.ne.s32.totalorder %s275, %s277
      %p284 = scmp.eq.s32.totalorder %s31, 1
      %p285 = por %p283, %p284
      %p286 = scmp.ne.s32.totalorder %s277, %s278
      %p287 = scmp.eq.s32.totalorder %s31, 0
      %p288 = por %p286, %p287
      %p289 = scmp.ne.s32.totalorder %s277, %s278
      %p290 = scmp.eq.s32.totalorder %s32, 1
      %p291 = por %p289, %p290
      %p293 = scmp.ne.s32.totalorder %s278, %s292
      %p294 = scmp.eq.s32.totalorder %s32, 0
      %p295 = por %p293, %p294
      %s296 = ssub.s32 %s26, %s33
      %p297 = scmp.eq.s32.totalorder %s296, 0
      %s299 = sadd.s32 %s298, 1
      %s300 = scalar_select %p297, %s298, %s299
      %p303 = pneg %p297
      %p304 = scmp.eq.s32.totalorder %s26, 1
      %p305 = por %p303, %p304
      %p306 = scmp.ne.s32.totalorder %s298, %s301
      %p307 = scmp.eq.s32.totalorder %s26, 0
      %p308 = por %p306, %p307
      %p309 = scmp.ne.s32.totalorder %s298, %s301
      %p310 = scmp.eq.s32.totalorder %s31, 1
      %p311 = por %p309, %p310
      %p312 = scmp.ne.s32.totalorder %s301, %s302
      %p313 = scmp.eq.s32.totalorder %s31, 0
      %p314 = por %p312, %p313
      %p315 = scmp.ne.s32.totalorder %s301, %s302
      %p316 = scmp.eq.s32.totalorder %s32, 1
      %p317 = por %p315, %p316
      %p319 = scmp.ne.s32.totalorder %s302, %s318
      %p320 = scmp.eq.s32.totalorder %s32, 0
      %p321 = por %p319, %p320
      %s322 = ssub.s32 %s26, %s33
      %p323 = scmp.eq.s32.totalorder %s322, 0
      %s325 = sadd.s32 %s324, 1
      %s326 = scalar_select %p323, %s324, %s325
      %p329 = pneg %p323
      %p330 = scmp.eq.s32.totalorder %s26, 1
      %p331 = por %p329, %p330
      %p332 = scmp.ne.s32.totalorder %s324, %s327
      %p333 = scmp.eq.s32.totalorder %s26, 0
      %p334 = por %p332, %p333
      %p335 = scmp.ne.s32.totalorder %s324, %s327
      %p336 = scmp.eq.s32.totalorder %s31, 1
      %p337 = por %p335, %p336
      %p338 = scmp.ne.s32.totalorder %s327, %s328
      %p339 = scmp.eq.s32.totalorder %s31, 0
      %p340 = por %p338, %p339
      %p341 = scmp.ne.s32.totalorder %s327, %s328
      %p342 = scmp.eq.s32.totalorder %s32, 1
      %p343 = por %p341, %p342
      %p345 = scmp.ne.s32.totalorder %s328, %s344
      %p346 = scmp.eq.s32.totalorder %s32, 0
      %p347 = por %p345, %p346
      %p348 = scmp.le.s32.totalorder 1, %s26
      %p349 = scmp.lt.s32.totalorder %s26, 3
      %p350 = pnand %p348, %p349
      %p351 = pneg %p350
      // Predicated region
      $region9: #{tpu_custom_call.1} parent=5 // pred_check
        _
      $region10: #{tpu_custom_call.1} parent=5 // pred_check_branch
        %353 = sbr.rel (%p350) target = $region12
      $region11: #{tpu_custom_call.1} parent=5 // pred_region
        %s354 = ssub.s32 %s26, 1
        // Predicated region
        $region13: #{tpu_custom_call.1} parent=11 // pred_check
          %p355 = pneg %p99
        $region14: #{tpu_custom_call.1} parent=11 // pred_check_branch
          %357 = sbr.rel (%p355) target = $region16
        $region15: #{tpu_custom_call.1} parent=11 // pred_region
          _
        $region16: #{tpu_custom_call.1} parent=11 // pred_fallthru
          _
        // Predicated region
        $region17: #{tpu_custom_call.1} parent=11 // pred_check
          %p358 = pneg %p120
        $region18: #{tpu_custom_call.1} parent=11 // pred_check_branch
          %360 = sbr.rel (%p358) target = $region20
        $region19: #{tpu_custom_call.1} parent=11 // pred_region
          _
        $region20: #{tpu_custom_call.1} parent=11 // pred_fallthru
          _
        // Predicated region
        $region21: #{tpu_custom_call.1} parent=11 // pred_check
          %p361 = pneg %p141
        $region22: #{tpu_custom_call.1} parent=11 // pred_check_branch
          %363 = sbr.rel (%p361) target = $region24
        $region23: #{tpu_custom_call.1} parent=11 // pred_region
          _
        $region24: #{tpu_custom_call.1} parent=11 // pred_fallthru
          _
        // Predicated region
        $region25: #{tpu_custom_call.1} parent=11 // pred_check
          %p364 = pneg %p162
        $region26: #{tpu_custom_call.1} parent=11 // pred_check_branch
          %366 = sbr.rel (%p364) target = $region28
        $region27: #{tpu_custom_call.1} parent=11 // pred_region
          _
        $region28: #{tpu_custom_call.1} parent=11 // pred_fallthru
          _
        // Predicated region
        $region29: #{tpu_custom_call.1} parent=11 // pred_check
          %p367 = pneg %p183
        $region30: #{tpu_custom_call.1} parent=11 // pred_check_branch
          %369 = sbr.rel (%p367) target = $region32
        $region31: #{tpu_custom_call.1} parent=11 // pred_region
          _
        $region32: #{tpu_custom_call.1} parent=11 // pred_fallthru
          _
        // Predicated region
        $region33: #{tpu_custom_call.1} parent=11 // pred_check
          %p370 = pneg %p204
        $region34: #{tpu_custom_call.1} parent=11 // pred_check_branch
          %372 = sbr.rel (%p370) target = $region36
        $region35: #{tpu_custom_call.1} parent=11 // pred_region
          _
        $region36: #{tpu_custom_call.1} parent=11 // pred_fallthru
          _
        // Predicated region
        $region37: #{tpu_custom_call.1} parent=11 // pred_check
          %p373 = pneg %p225
        $region38: #{tpu_custom_call.1} parent=11 // pred_check_branch
          %375 = sbr.rel (%p373) target = $region40
        $region39: #{tpu_custom_call.1} parent=11 // pred_region
          _
        $region40: #{tpu_custom_call.1} parent=11 // pred_fallthru
          _
        // Predicated region
        $region41: #{tpu_custom_call.1} parent=11 // pred_check
          %p376 = pneg %p246
        $region42: #{tpu_custom_call.1} parent=11 // pred_check_branch
          %378 = sbr.rel (%p376) target = $region44
        $region43: #{tpu_custom_call.1} parent=11 // pred_region
          _
        $region44: #{tpu_custom_call.1} parent=11 // pred_fallthru
          _
        // Predicated region
        $region45: #{tpu_custom_call.1} parent=11 // pred_check
          %p379 = pneg %p267
        $region46: #{tpu_custom_call.1} parent=11 // pred_check_branch
          %381 = sbr.rel (%p379) target = $region48
        $region47: #{tpu_custom_call.1} parent=11 // pred_region
          _
        $region48: #{tpu_custom_call.1} parent=11 // pred_fallthru
          _
        // Predicated region
        $region49: #{tpu_custom_call.1} parent=11 // pred_check
          %p382 = pneg %p288
        $region50: #{tpu_custom_call.1} parent=11 // pred_check_branch
          %384 = sbr.rel (%p382) target = $region52
        $region51: #{tpu_custom_call.1} parent=11 // pred_region
          _
        $region52: #{tpu_custom_call.1} parent=11 // pred_fallthru
          _
      $region12: #{tpu_custom_call.1} parent=5 // pred_fallthru
        _
      %p385 = scmp.lt.s32.totalorder %s26, 2
      // Predicated region
      $region53: #{tpu_custom_call.1} parent=5 // pred_check
        %p386 = pneg %p385
      $region54: #{tpu_custom_call.1} parent=5 // pred_check_branch
        %388 = sbr.rel (%p386) target = $region56
      $region55: #{tpu_custom_call.1} parent=5 // pred_region
        // Predicated region
        $region57: #{tpu_custom_call.1} parent=55 // pred_check
          %p389 = pneg %p46
        $region58: #{tpu_custom_call.1} parent=55 // pred_check_branch
          %391 = sbr.rel (%p389) target = $region60
        $region59: #{tpu_custom_call.1} parent=55 // pred_region
          %p392 = scmp.lt.s32.totalorder %s26, 1
          %s393 = scalar_select %p392, %s26, 1
          %s394 = smul.addr %s393, 4
          %s395 = scalar_lea.vmem %s0, %s394
        $region60: #{tpu_custom_call.1} parent=55 // pred_fallthru
          _
        // Predicated region
        $region61: #{tpu_custom_call.1} parent=55 // pred_check
          %p396 = pneg %p72
        $region62: #{tpu_custom_call.1} parent=55 // pred_check_branch
          %398 = sbr.rel (%p396) target = $region64
        $region63: #{tpu_custom_call.1} parent=55 // pred_region
          %p399 = scmp.lt.s32.totalorder %s26, 1
          %s400 = scalar_select %p399, %s26, 1
          %s401 = smul.addr %s400, 4
          %s402 = scalar_lea.vmem %s1, %s401
        $region64: #{tpu_custom_call.1} parent=55 // pred_fallthru
          _
      $region56: #{tpu_custom_call.1} parent=5 // pred_fallthru
        _
      %p403 = scmp.le.s32.totalorder 1, %s26
      %p404 = scmp.lt.s32.totalorder %s26, 3
      %p405 = pnand %p403, %p404
      %p406 = pneg %p405
      // Predicated region
      $region65: #{tpu_custom_call.1} parent=5 // pred_check
        _
      $region66: #{tpu_custom_call.1} parent=5 // pred_check_branch
        %408 = sbr.rel (%p405) target = $region68
      $region67: #{tpu_custom_call.1} parent=5 // pred_region
        %s409 = ssub.s32 %s26, 1
        %p410 = scmp.lt.s32.totalorder %s31, 1
        %s411 = scalar_select %p410, %s31, 1
        %s412 = smul.addr %s411, 4
        %s413 = scalar_lea.vmem %s0, %s412
        %p414 = pneg %p52
        %p415 = pneg %p49
        %p416 = scmp.lt.s32.totalorder %s31, 1
        %s417 = scalar_select %p416, %s31, 1
        %s418 = smul.addr %s417, 4
        %s419 = scalar_lea.vmem %s1, %s418
        %p420 = pneg %p78
        %p421 = pneg %p75
        %p422 = pneg %p99
        %p423 = pneg %p96
        %p424 = pneg %p120
        %p425 = pneg %p117
        %p426 = pneg %p141
        %p427 = pneg %p138
        %p428 = pneg %p162
        %p429 = pneg %p159
        %p430 = pneg %p183
        %p431 = pneg %p180
        %p432 = pneg %p204
        %p433 = pneg %p201
        %p434 = pneg %p225
        %p435 = pneg %p222
        %p436 = pneg %p246
        %p437 = pneg %p243
        %p438 = pneg %p267
        %p439 = pneg %p264
        %p440 = pneg %p288
        %p441 = pneg %p285
        %p442 = pneg %p314
        %p443 = pneg %p311
        %s444 = sand.u32 %s301, 1
        %s445 = scalar_lea.sflag [#allocation3], %s444
        %s446 = sand.u32 %s301, 1
        %s447 = smul.addr %s446, 8
        %s448 = scalar_lea.vmem [#allocation2], %s447
        %p449 = pneg %p340
        %p450 = pneg %p337
        %s451 = sand.u32 %s327, 1
        %s452 = scalar_lea.sflag [#allocation5], %s451
        %s453 = sand.u32 %s327, 1
        %s454 = smul.addr %s453, 8
        %s455 = scalar_lea.vmem [#allocation4], %s454
        %p456 = scmp.lt.s32.totalorder %s31, 1
        %s457 = scalar_select %p456, %s31, 1
        %s458 = smul.addr %s457, 4
        %s459 = scalar_lea.vmem %s0, %s458
        %p460 = scmp.lt.s32.totalorder %s31, 1
        %s461 = scalar_select %p460, %s31, 1
        %s462 = smul.addr %s461, 4
        %s463 = scalar_lea.vmem %s1, %s462
        %v465 = vld [vmem:[%s459] sm:$0xf]
        %v466 = vld [vmem:[%s463] sm:$0xf]
        %v467 = vld [vmem:[%s7] sm:$0xf]
        %v468 = vld [vmem:[%s7 + $0x4] sm:$0xf]
        %v469 = vld [vmem:[%s7 + $0x8] sm:$0xf]
        %v470 = vld [vmem:[%s7 + $0xc] sm:$0xf]
        %v471 = vld [vmem:[%s8] sm:$0xf]
        %vm472 = vcmask 64512
        %v474 = vsel %vm472, %v466, 0
        %vm476 = vcmask 1043456
        %v478 = vsel %vm476, %v471, 0
        %480 = vmatprep.subr.bf16.mxu0 0
        %481 = vmatpush1.bf16.msra.mxu0 %v478
        %482 = vmatprep.subr.bf16.mxu0 0
        %483 = vmatpush1.bf16.msra.mxu0 0
        %484 = vmatprep.subr.bf16.mxu0 0
        %485 = vmatpush1.bf16.msra.mxu0 0
        %486 = vmatprep.subr.bf16.mxu0 0
        %487 = vmatpush1.bf16.msra.mxu0 0
        %488 = vmatprep.subr.bf16.mxu0 0
        %489 = vmatpush1.bf16.msra.mxu0 0
        %490 = vmatprep.subr.bf16.mxu0 0
        %491 = vmatpush1.bf16.msra.mxu0 0
        %492 = vmatprep.subr.bf16.mxu0 0
        %493 = vmatpush1.bf16.msra.mxu0 0
        %494 = vmatprep.subr.bf16.mxu0 0
        %495 = vmatpush1.bf16.msra.mxu0 0
        %496 = vmatprep.subr.bf16.mxu0 0
        %497 = vmatpush1.bf16.msra.mxu0 0
        %498 = vmatprep.subr.bf16.mxu0 0
        %499 = vmatpush1.bf16.msra.mxu0 0
        %500 = vmatprep.subr.bf16.mxu0 0
        %501 = vmatpush1.bf16.msra.mxu0 0
        %502 = vmatprep.subr.bf16.mxu0 0
        %503 = vmatpush1.bf16.msra.mxu0 0
        %504 = vmatprep.subr.bf16.mxu0 0
        %505 = vmatpush1.bf16.msra.mxu0 0
        %506 = vmatprep.subr.bf16.mxu0 0
        %507 = vmatpush1.bf16.msra.mxu0 0
        %508 = vmatprep.subr.bf16.mxu0 0
        %509 = vmatpush1.bf16.msra.mxu0 0
        %510 = vmatprep.subr.bf16.mxu0 0
        %511 = vmatpush1.bf16.msra.mxu0 0
        %512 = vmatprep.mubr.bf16.mxu0 0
        %513 = vmatmul.mubr.bf16.gmra.mrb[0].mxu0 %v474
        %v514 = vpop.f32.mrb[0].mxu0
        %v515 = vadd.f32 0.0, %v514
        %v516 = vpop.f32.mrb[0].mxu0
        %v517 = vpop.f32.mrb[0].mxu0
        %v518 = vpop.f32.mrb[0].mxu0
        %519 = vdwg.mxu0
        %v524 = vunpack.c.l.b16 %v467
        %v525 = vunpack.c.l.b16 %v468
        %v526 = vunpack.c.l.b16 %v469
        %v527 = vunpack.c.l.b16 %v470
        %v528 = vpack.c.b16 %v525, %v524
        %v529 = vpack.c.b16 %v527, %v526
        %vm532 = vcmask 261120
        %v534 = vsel %vm532, %v465, 0
        %536 = vmatprep.subr.bf16.mxu0 0
        %537 = vmatpush1.bf16.msra.mxu0 %v528
        %538 = vmatprep.subr.bf16.mxu0 0
        %539 = vmatpush1.bf16.msra.mxu0 %v529
        %540 = vmatprep.subr.bf16.mxu0 0
        %541 = vmatpush1.bf16.msra.mxu0 0
        %542 = vmatprep.subr.bf16.mxu0 0
        %543 = vmatpush1.bf16.msra.mxu0 0
        %544 = vmatprep.subr.bf16.mxu0 0
        %545 = vmatpush1.bf16.msra.mxu0 0
        %546 = vmatprep.subr.bf16.mxu0 0
        %547 = vmatpush1.bf16.msra.mxu0 0
        %548 = vmatprep.subr.bf16.mxu0 0
        %549 = vmatpush1.bf16.msra.mxu0 0
        %550 = vmatprep.subr.bf16.mxu0 0
        %551 = vmatpush1.bf16.msra.mxu0 0
        %552 = vmatprep.subr.bf16.mxu0 0
        %553 = vmatpush1.bf16.msra.mxu0 0
        %554 = vmatprep.subr.bf16.mxu0 0
        %555 = vmatpush1.bf16.msra.mxu0 0
        %556 = vmatprep.subr.bf16.mxu0 0
        %557 = vmatpush1.bf16.msra.mxu0 0
        %558 = vmatprep.subr.bf16.mxu0 0
        %559 = vmatpush1.bf16.msra.mxu0 0
        %560 = vmatprep.subr.bf16.mxu0 0
        %561 = vmatpush1.bf16.msra.mxu0 0
        %562 = vmatprep.subr.bf16.mxu0 0
        %563 = vmatpush1.bf16.msra.mxu0 0
        %564 = vmatprep.subr.bf16.mxu0 0
        %565 = vmatpush1.bf16.msra.mxu0 0
        %566 = vmatprep.subr.bf16.mxu0 0
        %567 = vmatpush1.bf16.msra.mxu0 0
        %568 = vmatprep.mubr.bf16.mxu0 0
        %569 = vmatmul.mubr.bf16.gmra.mrb[0].mxu0 %v534
        %v570 = vpop.f32.mrb[0].mxu0
        %v571 = vadd.f32 %v515, %v570
        %v572 = vpop.f32.mrb[0].mxu0
        %v573 = vpop.f32.mrb[0].mxu0
        %v574 = vpop.f32.mrb[0].mxu0
        %575 = vdwg.mxu0
        %v576 = vld [vmem:[%s9] sm:$0x1]
        %v578 = vlaneseq
        %v579 = vshrl.u32 %v578, 7
        %v580 = vsub.s32 0, %v579
        %v581 = vrot.slane %v576, %v580
        %v583 = vadd.f32 %v571, %v581
        %v584 = vmul.f32 %v583, 0.5
        %v585 = vmul.f32 %v583, 0.70710677
        %vm586 = vcmp.ge.f32.partialorder %v585, 0.0
        %v587 = vsel %vm586, 1.0, -1.0
        %v588 = vand.u32 2147483647, %v585
        %v589 = vmul.f32 %v588, 0.3275911
        %v590 = vadd.f32 %v589, 1.0
        %v591 = vrcp.pop %v590
        %v592 = vmul.f32 1.0, %v591
        %v593 = vmul.f32 %v592, 1.0614054
        %v594 = vadd.f32 %v593, -1.4531521
        %v595 = vmul.f32 %v592, %v594
        %v596 = vadd.f32 %v595, 1.4214138
        %v597 = vmul.f32 %v592, %v596
        %v598 = vadd.f32 %v597, -0.28449672
        %v599 = vmul.f32 %v592, %v598
        %v600 = vadd.f32 %v599, 0.2548296
        %v601 = vmul.f32 %v592, %v600
        %v602 = vsub.f32 0.0, %v588
        %v603 = vmul.f32 %v602, %v588
        %v604 = vmul.f32 %v603, 1.442695
        %v605 = vpow.pop %v604
        %v606 = vmul.f32 %v601, %v605
        %v607 = vsub.f32 1.0, %v606
        %v608 = vmul.f32 %v587, %v607
        %v609 = vadd.f32 %v608, 1.0
        %v610 = vmul.f32 %v584, %v609
        %v611 = vpack.c.bf16 %v610, %v610
        %v612 = vld [vmem:[%s10] sm:$0xf]
        %v613 = vld [vmem:[%s10 + $0x4] sm:$0xf]
        %v614 = vld [vmem:[%s10 + $0x8] sm:$0xf]
        %v615 = vld [vmem:[%s11] sm:$0x1]
        %v617 = vlaneseq
        %v618 = vshrl.u32 %v617, 7
        %v619 = vsub.s32 0, %v618
        %v620 = vrot.slane %v615, %v619
        %v625 = vunpack.c.l.b16 %v612
        %v626 = vunpack.c.l.b16 %v613
        %v627 = vunpack.c.l.b16 %v614
        %v628 = vpack.c.b16 %v626, %v625
        %v629 = vpack.c.b16 %v627, %v627
        %vm631 = vcmask 195584
        %v633 = vsel %vm631, %v611, 0
        %v636 = vsel %vm476, %v629, 0
        %638 = vmatprep.subr.bf16.mxu0 0
        %639 = vmatpush1.bf16.msra.mxu0 %v628
        %640 = vmatprep.subr.bf16.mxu0 0
        %641 = vmatpush1.bf16.msra.mxu0 %v636
        %642 = vmatprep.subr.bf16.mxu0 0
        %643 = vmatpush1.bf16.msra.mxu0 0
        %644 = vmatprep.subr.bf16.mxu0 0
        %645 = vmatpush1.bf16.msra.mxu0 0
        %646 = vmatprep.subr.bf16.mxu0 0
        %647 = vmatpush1.bf16.msra.mxu0 0
        %648 = vmatprep.subr.bf16.mxu0 0
        %649 = vmatpush1.bf16.msra.mxu0 0
        %650 = vmatprep.subr.bf16.mxu0 0
        %651 = vmatpush1.bf16.msra.mxu0 0
        %652 = vmatprep.subr.bf16.mxu0 0
        %653 = vmatpush1.bf16.msra.mxu0 0
        %654 = vmatprep.subr.bf16.mxu0 0
        %655 = vmatpush1.bf16.msra.mxu0 0
        %656 = vmatprep.subr.bf16.mxu0 0
        %657 = vmatpush1.bf16.msra.mxu0 0
        %658 = vmatprep.subr.bf16.mxu0 0
        %659 = vmatpush1.bf16.msra.mxu0 0
        %660 = vmatprep.subr.bf16.mxu0 0
        %661 = vmatpush1.bf16.msra.mxu0 0
        %662 = vmatprep.subr.bf16.mxu0 0
        %663 = vmatpush1.bf16.msra.mxu0 0
        %664 = vmatprep.subr.bf16.mxu0 0
        %665 = vmatpush1.bf16.msra.mxu0 0
        %666 = vmatprep.subr.bf16.mxu0 0
        %667 = vmatpush1.bf16.msra.mxu0 0
        %668 = vmatprep.subr.bf16.mxu0 0
        %669 = vmatpush1.bf16.msra.mxu0 0
        %670 = vmatprep.mubr.bf16.mxu0 0
        %671 = vmatmul.mubr.bf16.gmra.mrb[0].mxu0 %v633
        %v672 = vpop.f32.mrb[0].mxu0
        %v673 = vadd.f32 %v620, %v672
        %v674 = vpop.f32.mrb[0].mxu0
        %v675 = vpop.f32.mrb[0].mxu0
        %v676 = vpop.f32.mrb[0].mxu0
        %677 = vdwg.mxu0
        %v678 = vxor.u32 %v673, 2147483648
        %v679 = vmul.f32 %v678, 1.442695
        %v680 = vpow.pop %v679
        %v681 = vadd.f32 %v680, 1.0
        %v682 = vrcp.pop %v681
        %v683 = vmul.f32 1.0, %v682
        %vm684 = vcmask 31744
        %v685 = vsel %vm684, %v673, -inf
        %686 = vmax.xlane.f32.xlu0 %v685
        %v687 = vpop.xlane.xlu0 %686
        %v688 = vsub.f32 %v673, %v687
        %v689 = vmul.f32 %v688, 1.442695
        %v690 = vpow.pop %v689
        %v691 = vsel %vm684, %v690, 0.0
        %692 = vadd.xlane.f32.xlu0 %v691
        %v693 = vpop.xlane.xlu0 %692
        %v694 = vrcp.pop %v693
        %v695 = vmul.f32 %v690, %v694
        %v696 = vlaneseq
        %v697 = vand.u32 %v696, 127
        %v698 = vsel %vm684, %v695, -inf
        %699 = vmax.xlane.f32.xlu0 %v698
        %v700 = vpop.xlane.xlu0 %699
        %vm701 = vcmp.eq.f32.partialorder %v695, %v700
        %v702 = vsel %vm701, %v697, 4
        %v703 = vsel %vm684, %v702, 2147483647
        %v704 = vand.u32 %v703, 65535
        %v705 = vshra.s32 %v703, 16
        %v706 = vcvt.s32.f32 %v704
        %v707 = vcvt.s32.f32 %v705
        %708 = vmin.xlane.f32.xlu0 %v707
        %v709 = vpop.xlane.xlu0 %708
        %vm710 = vcmp.eq.f32.partialorder %v707, %v709
        %v711 = vsel %vm710, %v706, inf
        %712 = vmin.xlane.f32.xlu0 %v711
        %v713 = vpop.xlane.xlu0 %712
        %v714 = vcvt.f32.s32 %v713
        %v715 = vcvt.f32.s32 %v709
        %v716 = vshll.u32 %v715, 16
        %v717 = vadd.s32 %v716, %v714
        %vm718 = vcmp.eq.s32.totalorder %v697, %v717
        %v719 = vsel %vm718, -inf, %v695
        %v720 = vsel %vm684, %v719, -inf
        %721 = vmax.xlane.f32.xlu0 %v720
        %v722 = vpop.xlane.xlu0 %721
        %vm723 = vcmp.eq.f32.partialorder %v719, %v722
        %v724 = vsel %vm723, %v697, 4
        %v725 = vsel %vm684, %v724, 2147483647
        %v726 = vand.u32 %v725, 65535
        %v727 = vshra.s32 %v725, 16
        %v728 = vcvt.s32.f32 %v726
        %v729 = vcvt.s32.f32 %v727
        %730 = vmin.xlane.f32.xlu0 %v729
        %v731 = vpop.xlane.xlu0 %730
        %vm732 = vcmp.eq.f32.partialorder %v729, %v731
        %v733 = vsel %vm732, %v728, inf
        %734 = vmin.xlane.f32.xlu0 %v733
        %v735 = vpop.xlane.xlu0 %734
        %v736 = vcvt.f32.s32 %v735
        %v737 = vcvt.f32.s32 %v731
        %v738 = vshll.u32 %v737, 16
        %v739 = vadd.s32 %v738, %v736
        %v740 = vadd.f32 %v700, %v722
        %v741 = vrcp.pop %v740
        %v742 = vmul.f32 %v700, %v741
        %v743 = vmul.f32 %v722, %v741
        %v744 = vlaneseq
        %v745 = vshrl.u32 %v744, 7
        %s746 = smul.u32 %s31, 8
        %v747 = vstv %s746
        %v748 = vadd.s32 %v745, %v747
        %vm749 = vcmp.lt.s32.totalorder %v748, 16
        %v750 = vsel %vm749, 1, 0
        %v751 = vcvt.s32.f32 %v750
        %v752 = vld [vmem:[%s2] sm:$0xff]
        %v753 = vld [vmem:[%s2 + $0x8] sm:$0xff]
        %v754 = vld [vmem:[%s2 + $0x10] sm:$0xff]
        %v755 = vld [vmem:[%s2 + $0x18] sm:$0xff]
        %v756 = vld [vmem:[%s3] sm:$0x3]
        %v758 = vlaneseq
        %v759 = vshrl.u32 %v758, 7
        %v760 = vsub.s32 0, %v759
        %v761 = vrot.slane %v756, %v760
        %v762 = vlaneseq
        %v763 = vshrl.u32 %v762, 7
        %v764 = vsub.s32 1, %v763
        %v765 = vrot.slane %v756, %v764
        %v772 = vunpack.c.l.b16 %v752
        %v773 = vunpack.c.h.b16 %v752
        %v774 = vunpack.c.l.b16 %v753
        %v775 = vunpack.c.h.b16 %v753
        %v776 = vunpack.c.l.b16 %v754
        %v777 = vunpack.c.h.b16 %v754
        %v778 = vunpack.c.l.b16 %v755
        %v779 = vunpack.c.h.b16 %v755
        %v780 = vpack.c.b16 %v774, %v772
        %v781 = vpack.c.b16 %v775, %v773
        %v782 = vpack.c.b16 %v778, %v776
        %v783 = vpack.c.b16 %v779, %v777
        %788 = vmatprep.subr.bf16.mxu0 %v781
        %789 = vmatpush1.bf16.msra.mxu0 %v780
        %790 = vmatprep.subr.bf16.mxu0 %v783
        %791 = vmatpush1.bf16.msra.mxu0 %v782
        %792 = vmatprep.subr.bf16.mxu0 0
        %793 = vmatpush1.bf16.msra.mxu0 0
        %794 = vmatprep.subr.bf16.mxu0 0
        %795 = vmatpush1.bf16.msra.mxu0 0
        %796 = vmatprep.subr.bf16.mxu0 0
        %797 = vmatpush1.bf16.msra.mxu0 0
        %798 = vmatprep.subr.bf16.mxu0 0
        %799 = vmatpush1.bf16.msra.mxu0 0
        %800 = vmatprep.subr.bf16.mxu0 0
        %801 = vmatpush1.bf16.msra.mxu0 0
        %802 = vmatprep.subr.bf16.mxu0 0
        %803 = vmatpush1.bf16.msra.mxu0 0
        %804 = vmatprep.subr.bf16.mxu0 0
        %805 = vmatpush1.bf16.msra.mxu0 0
        %806 = vmatprep.subr.bf16.mxu0 0
        %807 = vmatpush1.bf16.msra.mxu0 0
        %808 = vmatprep.subr.bf16.mxu0 0
        %809 = vmatpush1.bf16.msra.mxu0 0
        %810 = vmatprep.subr.bf16.mxu0 0
        %811 = vmatpush1.bf16.msra.mxu0 0
        %812 = vmatprep.subr.bf16.mxu0 0
        %813 = vmatpush1.bf16.msra.mxu0 0
        %814 = vmatprep.subr.bf16.mxu0 0
        %815 = vmatpush1.bf16.msra.mxu0 0
        %816 = vmatprep.subr.bf16.mxu0 0
        %817 = vmatpush1.bf16.msra.mxu0 0
        %818 = vmatprep.subr.bf16.mxu0 0
        %819 = vmatpush1.bf16.msra.mxu0 0
        %820 = vmatprep.mubr.bf16.mxu0 0
        %821 = vmatmul.mubr.bf16.gmra.mrb[0].mxu0 %v534
        %v822 = vpop.f32.mrb[0].mxu0
        %v823 = vadd.f32 %v761, %v822
        %v824 = vpop.f32.mrb[0].mxu0
        %v825 = vadd.f32 %v765, %v824
        %v826 = vpop.f32.mrb[0].mxu0
        %v827 = vpop.f32.mrb[0].mxu0
        %828 = vdwg.mxu0
        %v829 = vld [vmem:[%s4] sm:$0x3]
        %v830 = vld [vmem:[%s5] sm:$0x3]
        %vm831 = vcmp.eq.s32.totalorder %v717, 0
        %v832 = vsel %vm831, %v742, 0.0
        %vm833 = vcmp.eq.s32.totalorder %v739, 0
        %v834 = vsel %vm833, %v743, 0.0
        %v835 = vadd.f32 %v832, %v834
        %vm836 = vmor %vm831, %vm833
        %v837 = vsel %vm836, 1, 0
        %v838 = vcvt.s32.f32 %v837
        %v839 = vmul.f32 %v838, %v751
        %v840 = vrot.slane %v839, 4
        %v841 = vadd.f32 %v839, %v840
        %v842 = vrot.slane %v841, 2
        %v843 = vadd.f32 %v841, %v842
        %v844 = vrot.slane %v843, 1
        %v845 = vadd.f32 %v843, %v844
        %vm846 = vcmask 130048
        %v847 = vsel %vm846, %v823, 0.0
        %848 = vadd.xlane.f32.xlu0 %v847
        %v849 = vpop.xlane.xlu0 %848
        %v850 = vmul.f32 %v849, 0.0625
        %v851 = vmul.f32 %v823, %v823
        %v852 = vsel %vm846, %v851, 0.0
        %853 = vadd.xlane.f32.xlu0 %v852
        %v854 = vpop.xlane.xlu0 %853
        %v855 = vmul.f32 %v854, 0.0625
        %v856 = vmul.f32 %v850, %v850
        %v857 = vsub.f32 %v855, %v856
        %v858 = vadd.f32 %v857, 1e-05
        %v859 = vrsqrt.pop %v858
        %v860 = vsub.f32 %v823, %v850
        %v861 = vmul.f32 %v860, %v859
        %v863 = vlaneseq
        %v864 = vshrl.u32 %v863, 7
        %v865 = vsub.s32 0, %v864
        %v866 = vrot.slane %v829, %v865
        %v868 = vmul.f32 %v861, %v866
        %v870 = vlaneseq
        %v871 = vshrl.u32 %v870, 7
        %v872 = vsub.s32 0, %v871
        %v873 = vrot.slane %v830, %v872
        %v875 = vadd.f32 %v868, %v873
        %v876 = vmul.f32 %v875, 0.5
        %v877 = vmul.f32 %v875, 0.70710677
        %vm878 = vcmp.ge.f32.partialorder %v877, 0.0
        %v879 = vsel %vm878, 1.0, -1.0
        %v880 = vand.u32 2147483647, %v877
        %v881 = vmul.f32 %v880, 0.3275911
        %v882 = vadd.f32 %v881, 1.0
        %v883 = vrcp.pop %v882
        %v884 = vmul.f32 1.0, %v883
        %v885 = vmul.f32 %v884, 1.0614054
        %v886 = vadd.f32 %v885, -1.4531521
        %v887 = vmul.f32 %v884, %v886
        %v888 = vadd.f32 %v887, 1.4214138
        %v889 = vmul.f32 %v884, %v888
        %v890 = vadd.f32 %v889, -0.28449672
        %v891 = vmul.f32 %v884, %v890
        %v892 = vadd.f32 %v891, 0.2548296
        %v893 = vmul.f32 %v884, %v892
        %v894 = vsub.f32 0.0, %v880
        %v895 = vmul.f32 %v894, %v880
        %v896 = vmul.f32 %v895, 1.442695
        %v897 = vpow.pop %v896
        %v898 = vmul.f32 %v893, %v897
        %v899 = vsub.f32 1.0, %v898
        %v900 = vmul.f32 %v879, %v899
        %v901 = vadd.f32 %v900, 1.0
        %v902 = vmul.f32 %v876, %v901
        %v903 = vmul.f32 %v835, %v902
        %vm904 = vcmp.eq.s32.totalorder %v717, 1
        %v905 = vsel %vm904, %v742, 0.0
        %vm906 = vcmp.eq.s32.totalorder %v739, 1
        %v907 = vsel %vm906, %v743, 0.0
        %v908 = vadd.f32 %v905, %v907
        %vm909 = vmor %vm904, %vm906
        %v910 = vsel %vm909, 1, 0
        %v911 = vcvt.s32.f32 %v910
        %v912 = vmul.f32 %v911, %v751
        %v913 = vrot.slane %v912, 4
        %v914 = vadd.f32 %v912, %v913
        %v915 = vrot.slane %v914, 2
        %v916 = vadd.f32 %v914, %v915
        %v917 = vrot.slane %v916, 1
        %v918 = vadd.f32 %v916, %v917
        %920 = vrot.lane.b32.xlu0 %v823, 112
        %v921 = vpop.permute.xlu0 %920
        %v923 = vsel %vm532, %v921, 0.0
        %924 = vadd.xlane.f32.xlu0 %v923
        %v925 = vpop.xlane.xlu0 %924
        %v926 = vmul.f32 %v925, 0.03125
        %928 = vrot.lane.b32.xlu0 %v851, 112
        %v929 = vpop.permute.xlu0 %928
        %v931 = vsel %vm532, %v929, 0.0
        %932 = vadd.xlane.f32.xlu0 %v931
        %v933 = vpop.xlane.xlu0 %932
        %v934 = vmul.f32 %v933, 0.03125
        %v935 = vmul.f32 %v926, %v926
        %v936 = vsub.f32 %v934, %v935
        %v937 = vadd.f32 %v936, 1e-05
        %v938 = vrsqrt.pop %v937
        %v939 = vsub.f32 %v823, %v926
        %v940 = vmul.f32 %v939, %v938
        %v941 = vmul.f32 %v940, %v866
        %v942 = vadd.f32 %v941, %v873
        %v943 = vmul.f32 %v942, 0.5
        %v944 = vmul.f32 %v942, 0.70710677
        %vm945 = vcmp.ge.f32.partialorder %v944, 0.0
        %v946 = vsel %vm945, 1.0, -1.0
        %v947 = vand.u32 2147483647, %v944
        %v948 = vmul.f32 %v947, 0.3275911
        %v949 = vadd.f32 %v948, 1.0
        %v950 = vrcp.pop %v949
        %v951 = vmul.f32 1.0, %v950
        %v952 = vmul.f32 %v951, 1.0614054
        %v953 = vadd.f32 %v952, -1.4531521
        %v954 = vmul.f32 %v951, %v953
        %v955 = vadd.f32 %v954, 1.4214138
        %v956 = vmul.f32 %v951, %v955
        %v957 = vadd.f32 %v956, -0.28449672
        %v958 = vmul.f32 %v951, %v957
        %v959 = vadd.f32 %v958, 0.2548296
        %v960 = vmul.f32 %v951, %v959
        %v961 = vsub.f32 0.0, %v947
        %v962 = vmul.f32 %v961, %v947
        %v963 = vmul.f32 %v962, 1.442695
        %v964 = vpow.pop %v963
        %v965 = vmul.f32 %v960, %v964
        %v966 = vsub.f32 1.0, %v965
        %v967 = vmul.f32 %v946, %v966
        %v968 = vadd.f32 %v967, 1.0
        %v969 = vmul.f32 %v943, %v968
        %v970 = vmul.f32 %v908, %v969
        %vm971 = vcmp.eq.s32.totalorder %v717, 2
        %v972 = vsel %vm971, %v742, 0.0
        %vm973 = vcmp.eq.s32.totalorder %v739, 2
        %v974 = vsel %vm973, %v743, 0.0
        %v975 = vadd.f32 %v972, %v974
        %vm976 = vmor %vm971, %vm973
        %v977 = vsel %vm976, 1, 0
        %v978 = vcvt.s32.f32 %v977
        %v979 = vmul.f32 %v978, %v751
        %v980 = vrot.slane %v979, 4
        %v981 = vadd.f32 %v979, %v980
        %v982 = vrot.slane %v981, 2
        %v983 = vadd.f32 %v981, %v982
        %v984 = vrot.slane %v983, 1
        %v985 = vadd.f32 %v983, %v984
        %986 = vrot.lane.b32.xlu0 %v823, 80
        %v987 = vpop.permute.xlu0 %986
        %vm989 = vcmask 392192
        %v990 = vsel %vm989, %v987, 0.0
        %991 = vadd.xlane.f32.xlu0 %v990
        %v992 = vpop.xlane.xlu0 %991
        %v993 = vmul.f32 %v992, 0.020833334
        %994 = vrot.lane.b32.xlu0 %v851, 80
        %v995 = vpop.permute.xlu0 %994
        %v997 = vsel %vm989, %v995, 0.0
        %998 = vadd.xlane.f32.xlu0 %v997
        %v999 = vpop.xlane.xlu0 %998
        %v1000 = vmul.f32 %v999, 0.020833334
        %v1001 = vmul.f32 %v993, %v993
        %v1002 = vsub.f32 %v1000, %v1001
        %v1003 = vadd.f32 %v1002, 1e-05
        %v1004 = vrsqrt.pop %v1003
        %v1005 = vsub.f32 %v823, %v993
        %v1006 = vmul.f32 %v1005, %v1004
        %v1007 = vmul.f32 %v1006, %v866
        %v1008 = vadd.f32 %v1007, %v873
        %v1009 = vmul.f32 %v1008, 0.5
        %v1010 = vmul.f32 %v1008, 0.70710677
        %vm1011 = vcmp.ge.f32.partialorder %v1010, 0.0
        %v1012 = vsel %vm1011, 1.0, -1.0
        %v1013 = vand.u32 2147483647, %v1010
        %v1014 = vmul.f32 %v1013, 0.3275911
        %v1015 = vadd.f32 %v1014, 1.0
        %v1016 = vrcp.pop %v1015
        %v1017 = vmul.f32 1.0, %v1016
        %v1018 = vmul.f32 %v1017, 1.0614054
        %v1019 = vadd.f32 %v1018, -1.4531521
        %v1020 = vmul.f32 %v1017, %v1019
        %v1021 = vadd.f32 %v1020, 1.4214138
        %v1022 = vmul.f32 %v1017, %v1021
        %v1023 = vadd.f32 %v1022, -0.28449672
        %v1024 = vmul.f32 %v1017, %v1023
        %v1025 = vadd.f32 %v1024, 0.2548296
        %v1026 = vmul.f32 %v1017, %v1025
        %v1027 = vsub.f32 0.0, %v1013
        %v1028 = vmul.f32 %v1027, %v1013
        %v1029 = vmul.f32 %v1028, 1.442695
        %v1030 = vpow.pop %v1029
        %v1031 = vmul.f32 %v1026, %v1030
        %v1032 = vsub.f32 1.0, %v1031
        %v1033 = vmul.f32 %v1012, %v1032
        %v1034 = vadd.f32 %v1033, 1.0
        %v1035 = vmul.f32 %v1009, %v1034
        %v1036 = vmul.f32 %v975, %v1035
        %vm1037 = vcmp.eq.s32.totalorder %v717, 3
        %v1038 = vsel %vm1037, %v742, 0.0
        %vm1039 = vcmp.eq.s32.totalorder %v739, 3
        %v1040 = vsel %vm1039, %v743, 0.0
        %v1041 = vadd.f32 %v1038, %v1040
        %vm1042 = vmor %vm1037, %vm1039
        %v1043 = vsel %vm1042, 1, 0
        %v1044 = vcvt.s32.f32 %v1043
        %v1045 = vmul.f32 %v1044, %v751
        %v1046 = vrot.slane %v1045, 4
        %v1047 = vadd.f32 %v1045, %v1046
        %v1048 = vrot.slane %v1047, 2
        %v1049 = vadd.f32 %v1047, %v1048
        %v1050 = vrot.slane %v1049, 1
        %v1051 = vadd.f32 %v1049, %v1050
        %1053 = vrot.lane.b32.xlu0 %v823, 32
        %v1054 = vpop.permute.xlu0 %1053
        %1055 = vrot.lane.b32.xlu0 %v825, 32
        %v1056 = vpop.permute.xlu0 %1055
        %v1057 = vsel %vm532, %v1054, %v1056
        %vm1059 = vcmask 523264
        %v1060 = vsel %vm1059, %v1057, 0.0
        %1061 = vadd.xlane.f32.xlu0 %v1060
        %v1062 = vpop.xlane.xlu0 %1061
        %v1063 = vmul.f32 %v1062, 0.015625
        %v1064 = vmul.f32 %v825, %v825
        %1066 = vrot.lane.b32.xlu0 %v851, 32
        %v1067 = vpop.permute.xlu0 %1066
        %1068 = vrot.lane.b32.xlu0 %v1064, 32
        %v1069 = vpop.permute.xlu0 %1068
        %v1070 = vsel %vm532, %v1067, %v1069
        %v1072 = vsel %vm1059, %v1070, 0.0
        %1073 = vadd.xlane.f32.xlu0 %v1072
        %v1074 = vpop.xlane.xlu0 %1073
        %v1075 = vmul.f32 %v1074, 0.015625
        %v1076 = vmul.f32 %v1063, %v1063
        %v1077 = vsub.f32 %v1075, %v1076
        %v1078 = vadd.f32 %v1077, 1e-05
        %v1079 = vrsqrt.pop %v1078
        %v1080 = vsub.f32 %v823, %v1063
        %v1081 = vsub.f32 %v825, %v1063
        %v1082 = vmul.f32 %v1080, %v1079
        %v1083 = vmul.f32 %v1081, %v1079
        %v1084 = vlaneseq
        %v1085 = vshrl.u32 %v1084, 7
        %v1086 = vsub.s32 1, %v1085
        %v1087 = vrot.slane %v829, %v1086
        %v1089 = vmul.f32 %v1082, %v866
        %v1090 = vmul.f32 %v1083, %v1087
        %v1091 = vlaneseq
        %v1092 = vshrl.u32 %v1091, 7
        %v1093 = vsub.s32 1, %v1092
        %v1094 = vrot.slane %v830, %v1093
        %v1096 = vadd.f32 %v1089, %v873
        %v1097 = vadd.f32 %v1090, %v1094
        %v1098 = vmul.f32 %v1096, 0.5
        %v1099 = vmul.f32 %v1097, 0.5
        %v1100 = vmul.f32 %v1096, 0.70710677
        %v1101 = vmul.f32 %v1097, 0.70710677
        %vm1102 = vcmp.ge.f32.partialorder %v1100, 0.0
        %vm1103 = vcmp.ge.f32.partialorder %v1101, 0.0
        %v1104 = vsel %vm1102, 1.0, -1.0
        %v1105 = vsel %vm1103, 1.0, -1.0
        %v1106 = vand.u32 2147483647, %v1100
        %v1107 = vand.u32 2147483647, %v1101
        %v1108 = vmul.f32 %v1106, 0.3275911
        %v1109 = vmul.f32 %v1107, 0.3275911
        %v1110 = vadd.f32 %v1108, 1.0
        %v1111 = vadd.f32 %v1109, 1.0
        %v1112 = vrcp.pop %v1110
        %v1113 = vmul.f32 1.0, %v1112
        %v1114 = vrcp.pop %v1111
        %v1115 = vmul.f32 1.0, %v1114
        %v1116 = vmul.f32 %v1113, 1.0614054
        %v1117 = vmul.f32 %v1115, 1.0614054
        %v1118 = vadd.f32 %v1116, -1.4531521
        %v1119 = vadd.f32 %v1117, -1.4531521
        %v1120 = vmul.f32 %v1113, %v1118
        %v1121 = vmul.f32 %v1115, %v1119
        %v1122 = vadd.f32 %v1120, 1.4214138
        %v1123 = vadd.f32 %v1121, 1.4214138
        %v1124 = vmul.f32 %v1113, %v1122
        %v1125 = vmul.f32 %v1115, %v1123
        %v1126 = vadd.f32 %v1124, -0.28449672
        %v1127 = vadd.f32 %v1125, -0.28449672
        %v1128 = vmul.f32 %v1113, %v1126
        %v1129 = vmul.f32 %v1115, %v1127
        %v1130 = vadd.f32 %v1128, 0.2548296
        %v1131 = vadd.f32 %v1129, 0.2548296
        %v1132 = vmul.f32 %v1113, %v1130
        %v1133 = vmul.f32 %v1115, %v1131
        %v1134 = vsub.f32 0.0, %v1106
        %v1135 = vsub.f32 0.0, %v1107
        %v1136 = vmul.f32 %v1134, %v1106
        %v1137 = vmul.f32 %v1135, %v1107
        %v1138 = vmul.f32 %v1136, 1.442695
        %v1139 = vpow.pop %v1138
        %v1140 = vmul.f32 %v1137, 1.442695
        %v1141 = vpow.pop %v1140
        %v1142 = vmul.f32 %v1132, %v1139
        %v1143 = vmul.f32 %v1133, %v1141
        %v1144 = vsub.f32 1.0, %v1142
        %v1145 = vsub.f32 1.0, %v1143
        %v1146 = vmul.f32 %v1104, %v1144
        %v1147 = vmul.f32 %v1105, %v1145
        %v1148 = vadd.f32 %v1146, 1.0
        %v1149 = vadd.f32 %v1147, 1.0
        %v1150 = vmul.f32 %v1098, %v1148
        %v1151 = vmul.f32 %v1099, %v1149
        %v1152 = vmul.f32 %v1041, %v1150
        %v1153 = vmul.f32 %v1041, %v1151
        %v1154 = vsel %vm846, %v903, %v970
        %v1155 = vsel %vm989, %v1154, %v1036
        %vm1156 = vcmask 785408
        %v1157 = vsel %vm1156, %v1155, %v1152
        %v1158 = vsel %vm532, %v1153, %v835
        %vm1159 = vcmask 269312
        %v1160 = vsel %vm1159, %v1158, %v908
        %vm1161 = vcmask 277504
        %v1162 = vsel %vm1161, %v1160, %v975
        %vm1163 = vcmask 285696
        %v1164 = vsel %vm1163, %v1162, %v1041
        %v1165 = vpack.c.bf16 %v1157, %v1157
        %v1166 = vpack.c.bf16 %v1164, %v1164
        %v1167 = vld [vmem:[%s6] sm:$0xf]
        %v1168 = vld [vmem:[%s6 + $0x4] sm:$0xf]
        %v1169 = vld [vmem:[%s6 + $0x8] sm:$0xf]
        %v1170 = vld [vmem:[%s6 + $0xc] sm:$0xf]
        %v1171 = vld [vmem:[%s6 + $0x10] sm:$0xf]
        %v1172 = vld [vmem:[%s6 + $0x14] sm:$0xf]
        %v1173 = vld [vmem:[%s6 + $0x18] sm:$0xf]
        %v1174 = vld [vmem:[%s6 + $0x1c] sm:$0xf]
        %v1175 = vld [vmem:[%s6 + $0x20] sm:$0xf]
        %v1176 = vld [vmem:[%s6 + $0x24] sm:$0xf]
        %v1177 = vld [vmem:[%s6 + $0x28] sm:$0xf]
        %v1178 = vld [vmem:[%s6 + $0x2c] sm:$0xf]
        %v1179 = vld [vmem:[%s6 + $0x30] sm:$0xf]
        %v1180 = vld [vmem:[%s6 + $0x34] sm:$0xf]
        %v1181 = vld [vmem:[%s6 + $0x38] sm:$0xf]
        %v1182 = vld [vmem:[%s6 + $0x3c] sm:$0xf]
        %v1183 = vld [vmem:[%s6 + $0x40] sm:$0xf]
        %v1184 = vld [vmem:[%s6 + $0x44] sm:$0xf]
        %v1185 = vld [vmem:[%s6 + $0x48] sm:$0xf]
        %v1186 = vld [vmem:[%s6 + $0x4c] sm:$0xf]
        %v1187 = vld [vmem:[%s6 + $0x50] sm:$0x3]
        %v1209 = vunpack.c.l.b16 %v1167
        %v1210 = vunpack.c.l.b16 %v1168
        %v1211 = vunpack.c.l.b16 %v1169
        %v1212 = vunpack.c.l.b16 %v1170
        %v1213 = vunpack.c.l.b16 %v1171
        %v1214 = vunpack.c.l.b16 %v1172
        %v1215 = vunpack.c.l.b16 %v1173
        %v1216 = vunpack.c.l.b16 %v1174
        %v1217 = vunpack.c.l.b16 %v1175
        %v1218 = vunpack.c.l.b16 %v1176
        %v1219 = vunpack.c.l.b16 %v1177
        %v1220 = vunpack.c.l.b16 %v1178
        %v1221 = vunpack.c.l.b16 %v1179
        %v1222 = vunpack.c.l.b16 %v1180
        %v1223 = vunpack.c.l.b16 %v1181
        %v1224 = vunpack.c.l.b16 %v1182
        %v1225 = vunpack.c.l.b16 %v1183
        %v1226 = vunpack.c.l.b16 %v1184
        %v1227 = vunpack.c.l.b16 %v1185
        %v1228 = vunpack.c.l.b16 %v1186
        %v1229 = vunpack.c.l.b16 %v1187
        %v1230 = vpack.c.b16 %v1210, %v1209
        %v1231 = vpack.c.b16 %v1212, %v1211
        %v1232 = vpack.c.b16 %v1214, %v1213
        %v1233 = vpack.c.b16 %v1216, %v1215
        %v1234 = vpack.c.b16 %v1218, %v1217
        %v1235 = vpack.c.b16 %v1220, %v1219
        %v1236 = vpack.c.b16 %v1222, %v1221
        %v1237 = vpack.c.b16 %v1224, %v1223
        %v1238 = vpack.c.b16 %v1226, %v1225
        %v1239 = vpack.c.b16 %v1228, %v1227
        %v1240 = vpack.c.b16 %v1229, %v1229
        %vm1251 = vcmask 293888
        %v1253 = vsel %vm1251, %v1166, 0
        %vm1255 = vcmask 1041408
        %v1257 = vsel %vm1255, %v1240, 0
        %1259 = vmatprep.subr.bf16.mxu0 0
        %1260 = vmatpush1.bf16.msra.mxu0 %v1230
        %1261 = vmatprep.subr.bf16.mxu0 0
        %1262 = vmatpush1.bf16.msra.mxu0 %v1231
        %1263 = vmatprep.subr.bf16.mxu0 0
        %1264 = vmatpush1.bf16.msra.mxu0 %v1232
        %1265 = vmatprep.subr.bf16.mxu0 0
        %1266 = vmatpush1.bf16.msra.mxu0 %v1233
        %1267 = vmatprep.subr.bf16.mxu0 0
        %1268 = vmatpush1.bf16.msra.mxu0 %v1234
        %1269 = vmatprep.subr.bf16.mxu0 0
        %1270 = vmatpush1.bf16.msra.mxu0 %v1235
        %1271 = vmatprep.subr.bf16.mxu0 0
        %1272 = vmatpush1.bf16.msra.mxu0 %v1236
        %1273 = vmatprep.subr.bf16.mxu0 0
        %1274 = vmatpush1.bf16.msra.mxu0 %v1237
        %1275 = vmatprep.subr.bf16.mxu0 0
        %1276 = vmatpush1.bf16.msra.mxu0 %v1238
        %1277 = vmatprep.subr.bf16.mxu0 0
        %1278 = vmatpush1.bf16.msra.mxu0 %v1239
        %1279 = vmatprep.subr.bf16.mxu0 0
        %1280 = vmatpush1.bf16.msra.mxu0 %v1257
        %1281 = vmatprep.subr.bf16.mxu0 0
        %1282 = vmatpush1.bf16.msra.mxu0 0
        %1283 = vmatprep.subr.bf16.mxu0 0
        %1284 = vmatpush1.bf16.msra.mxu0 0
        %1285 = vmatprep.subr.bf16.mxu0 0
        %1286 = vmatpush1.bf16.msra.mxu0 0
        %1287 = vmatprep.subr.bf16.mxu0 0
        %1288 = vmatpush1.bf16.msra.mxu0 0
        %1289 = vmatprep.subr.bf16.mxu0 0
        %1290 = vmatpush1.bf16.msra.mxu0 0
        %1291 = vmatprep.mubr.bf16.mxu0 %v1253
        %1292 = vmatmul.mubr.bf16.gmra.mrb[0].mxu0 %v1165
        %v1293 = vpop.f32.mrb[0].mxu0
        %v1294 = vadd.f32 0.0, %v1293
        %v1295 = vpop.f32.mrb[0].mxu0
        %v1296 = vpop.f32.mrb[0].mxu0
        %v1297 = vpop.f32.mrb[0].mxu0
        %1298 = vdwg.mxu0
        %1299 = vst.msk [vmem:[%s448] sm:$0xff] %vm532, %v1294
        %v1300 = vmul.f32 %v683, %v751
        %vm1301 = vcmask 39968
        %v1302 = vsel %vm1301, %v1300, 0.0
        %v1303 = vrot.slane %v1302, 4
        %v1304 = vadd.f32 %v1302, %v1303
        %v1305 = vrot.slane %v1304, 2
        %v1306 = vadd.f32 %v1304, %v1305
        %v1307 = vrot.slane %v1306, 1
        %v1308 = vadd.f32 %v1306, %v1307
        %vm1309 = vcmp.eq.s32.totalorder %v697, 4
        %1311 = vset.pattern.permute.xlu0 4
        %1312 = vperm.xlu0 %1311, %v1308
        %v1313 = vpop.permute.xlu0 %1312
        %v1315 = vsel %vm1309, %v1313, 0.0
        %vm1316 = vcmp.eq.s32.totalorder %v697, 0
        %v1317 = vsel %vm1316, %v845, 0.0
        %v1318 = vadd.f32 %v1315, %v1317
        %vm1319 = vcmp.eq.s32.totalorder %v697, 1
        %v1320 = vsel %vm1319, %v918, 0.0
        %v1321 = vadd.f32 %v1318, %v1320
        %vm1322 = vcmp.eq.s32.totalorder %v697, 2
        %v1323 = vsel %vm1322, %v985, 0.0
        %v1324 = vadd.f32 %v1321, %v1323
        %vm1325 = vcmp.eq.s32.totalorder %v697, 3
        %v1326 = vsel %vm1325, %v1051, 0.0
        %v1327 = vadd.f32 %v1324, %v1326
        %1328 = vst [vmem:[%s455] sm:$0xff] %v1327
        %s1329 = sand.u32 %s301, 1
        %s1330 = scalar_lea.sflag [#allocation3], %s1329
        %s1331 = sand.u32 %s301, 1
        %s1332 = smul.addr %s1331, 8
        %s1333 = scalar_lea.vmem [#allocation2], %s1332
        %s1334 = sand.u32 %s327, 1
        %s1335 = scalar_lea.sflag [#allocation5], %s1334
        %s1336 = sand.u32 %s327, 1
        %s1337 = smul.addr %s1336, 8
        %s1338 = scalar_lea.vmem [#allocation4], %s1337
        // Predicated region
        $region69: #{tpu_custom_call.1} parent=67 // pred_check
          %p1339 = pneg %p311
        $region70: #{tpu_custom_call.1} parent=67 // pred_check_branch
          %1341 = sbr.rel (%p1339) target = $region72
        $region71: #{tpu_custom_call.1} parent=67 // pred_region
          %s1343 = ssub.s32 128, 128
          %1344 = vsyncadd %s1330, %s1343
          %s1345 = smul.addr %s31, 128
          %s1346 = scalar_lea.hbm %s12, %s1345
          %s1348 = sshll.u32 %s1333, 4
          %s1349 = int_to_ptr.vmem [resolvable:$true] %s1348
          %1351 = dma.vmem_to_hbm [thread:$0]  %s1349, 128, %s1346, %s1330
        $region72: #{tpu_custom_call.1} parent=67 // pred_fallthru
          _
        // Predicated region
        $region73: #{tpu_custom_call.1} parent=67 // pred_check
          %p1352 = pneg %p337
        $region74: #{tpu_custom_call.1} parent=67 // pred_check_branch
          %1354 = sbr.rel (%p1352) target = $region76
        $region75: #{tpu_custom_call.1} parent=67 // pred_region
          %s1356 = ssub.s32 128, 128
          %1357 = vsyncadd %s1335, %s1356
          %s1358 = smul.addr %s31, 128
          %s1359 = scalar_lea.hbm %s13, %s1358
          %s1361 = sshll.u32 %s1338, 4
          %s1362 = int_to_ptr.vmem [resolvable:$true] %s1361
          %1364 = dma.vmem_to_hbm [thread:$0]  %s1362, 128, %s1359, %s1335
        $region76: #{tpu_custom_call.1} parent=67 // pred_fallthru
          _
      $region68: #{tpu_custom_call.1} parent=5 // pred_fallthru
        _
      %p1365 = scmp.le.s32.totalorder 2, %s26
      // Predicated region
      $region77: #{tpu_custom_call.1} parent=5 // pred_check
        %p1366 = pneg %p1365
      $region78: #{tpu_custom_call.1} parent=5 // pred_check_branch
        %1368 = sbr.rel (%p1366) target = $region80
      $region79: #{tpu_custom_call.1} parent=5 // pred_region
        %s1369 = ssub.s32 %s26, 2
        // Predicated region
        $region81: #{tpu_custom_call.1} parent=79 // pred_check
          %p1370 = pneg %p317
        $region82: #{tpu_custom_call.1} parent=79 // pred_check_branch
          %1372 = sbr.rel (%p1370) target = $region84
        $region83: #{tpu_custom_call.1} parent=79 // pred_region
          %s1373 = sand.u32 %s302, 1
          %s1374 = scalar_lea.sflag [#allocation3], %s1373
          %s1375 = sand.u32 %s302, 1
          %s1376 = smul.addr %s1375, 8
          %s1377 = scalar_lea.vmem [#allocation2], %s1376
          %1378 = dma.done %s1374, 128
        $region84: #{tpu_custom_call.1} parent=79 // pred_fallthru
          _
        // Predicated region
        $region85: #{tpu_custom_call.1} parent=79 // pred_check
          %p1379 = pneg %p343
        $region86: #{tpu_custom_call.1} parent=79 // pred_check_branch
          %1381 = sbr.rel (%p1379) target = $region88
        $region87: #{tpu_custom_call.1} parent=79 // pred_region
          %s1382 = sand.u32 %s328, 1
          %s1383 = scalar_lea.sflag [#allocation5], %s1382
          %s1384 = sand.u32 %s328, 1
          %s1385 = smul.addr %s1384, 8
          %s1386 = scalar_lea.vmem [#allocation4], %s1385
          %1387 = dma.done %s1383, 128
        $region88: #{tpu_custom_call.1} parent=79 // pred_fallthru
          _
      $region80: #{tpu_custom_call.1} parent=5 // pred_fallthru
        _
    $region6: #{tpu_custom_call.1} parent=1 // loop_footer
      %s30 = sadd.s32 1, %s26
    $region7: #{tpu_custom_call.1} parent=1 // loop_footer_branch
      %25 = sbr.rel target = $region3
    $region8: #{tpu_custom_call.1} parent=1 // loop_exit
      _
    %1388 = vsyncpa [#allocation3], 1
    %s1389 = scalar_lea.sflag [#allocation3], 1
    %1390 = vsyncpa %s1389, 1
    %1391 = vsyncpa [#allocation5], 1
    %s1392 = scalar_lea.sflag [#allocation5], 1
    %1393 = vsyncpa %s1392, 1

</llo_original>
